<compile_context>
chip_gen: v7x
topology: tpu7x:2x2x1
jax: 0.10.0
libtpu: 0.0.40
codegen_flags: <defaults>
</compile_context>

<pallas_src>
import math

import jax
import jax.numpy as jnp
from jax.experimental import pallas as pl
from jax.experimental.pallas import tpu as pltpu

# ---- hyperparameters (mirror DSNN.__init__ arguments) -----------------------
ARCH = (16, 128, 128, 8)       # architecture: input -> hidden -> hidden -> output
L = len(ARCH) - 1              # number of weight layers
BATCH = 8                      # batch_size
SIM_TIME = 6                   # simulation_time
ALPHA = 0.8                    # alpha
BETA = 0.9                     # beta
WEIGHT_SCALE = 1.0             # weight_scale
THRESHOLD = 0.5                # threshold
RESET_POTENTIAL = 0.0          # reset_potential

# ---- lane-dense packing of the recorded traces -------------------------------
def _pad128(d):
    return ((d + 127) // 128) * 128

MEM_PAD = [_pad128(ARCH[l + 1]) for l in range(L)]          # padded widths per layer
MEM_OFF = [sum(MEM_PAD[:l]) for l in range(L)]              # lane offsets (multiples of 128)
MEM_TOTAL = sum(MEM_PAD)                                    # 128 + 128 + 128 = 384
SPK_PAD = MEM_PAD[:L - 1]                                   # hidden layers only
SPK_OFF = MEM_OFF[:L - 1]
SPK_TOTAL = sum(SPK_PAD)                                    # 256


def _pad_lanes(v, pw):
    """Widen (B, d) to (B, pw) with zeros so the store is a full-width vst."""
    d = v.shape[-1]
    if pw == d:
        return v
    return jnp.concatenate(
        [v, jnp.zeros((v.shape[0], pw - d), v.dtype)], axis=-1)


# ---- Pallas kernel -----------------------------------------------------------
def dsnn_kernel(*refs):
    # ref order: x, W0..W_{L-1} | mem_all (T,B,MEM_TOTAL), spk_all (T,B,SPK_TOTAL)
    x_ref = refs[0]
    w_refs = refs[1:1 + L]
    mem_all_ref = refs[1 + L]
    spk_all_ref = refs[2 + L]

    B = BATCH

    # t == 0: the reference records all-zero membranes / spikes and skips the update.
    mem_all_ref[0] = jnp.zeros((B, MEM_TOTAL), jnp.float32)
    spk_all_ref[0] = jnp.zeros((B, SPK_TOTAL), jnp.float32)

    # Hoisted: x is constant over t and layer 0 has no alpha*syn carry,
    # so its synaptic input is x @ W0 at every timestep.
    h0 = jnp.dot(x_ref[...], w_refs[0][...], preferred_element_type=jnp.float32)

    # Loop-carried state lives in vregs (no VMEM scratch round-trips).
    syn = [jnp.zeros((B, ARCH[l + 1]), jnp.float32) for l in range(L)]
    mem = [jnp.zeros((B, ARCH[l + 1]), jnp.float32) for l in range(L)]

    for t in range(1, SIM_TIME):          # static unroll of the time loop
        prev_spk = None
        for l in range(L):
            if l == 0:
                new_syn = h0              # 0 * syn + x @ W0
            else:
                h = jnp.dot(prev_spk, w_refs[l][...],
                            preferred_element_type=jnp.float32)
                new_syn = ALPHA * syn[l] + h
            new_mem = BETA * mem[l] + new_syn
            if l < L - 1:                 # hidden layers spike + reset
                mthr = new_mem - THRESHOLD
                fired = mthr > 0.0
                spike = fired.astype(jnp.float32)   # SurrGradSpike forward = step fn
                new_mem = jnp.where(fired, jnp.float32(RESET_POTENTIAL), new_mem)
                spk_all_ref[t, :, pl.ds(SPK_OFF[l], SPK_PAD[l])] = \
                    _pad_lanes(spike, SPK_PAD[l])
                prev_spk = spike
            # Record post-reset membrane (matches reference ordering), lane-dense.
            mem_all_ref[t, :, pl.ds(MEM_OFF[l], MEM_PAD[l])] = \
                _pad_lanes(new_mem, MEM_PAD[l])
            syn[l] = new_syn
            mem[l] = new_mem


# ---- wrapper -----------------------------------------------------------------
def dsnn_forward(x, weights):
    vmem_spec = pl.BlockSpec(memory_space=pltpu.MemorySpace.VMEM)
    out_shapes = (
        jax.ShapeDtypeStruct((SIM_TIME, BATCH, MEM_TOTAL), jnp.float32),
        jax.ShapeDtypeStruct((SIM_TIME, BATCH, SPK_TOTAL), jnp.float32),
    )
    mem_all, spk_all = pl.pallas_call(
        dsnn_kernel,
        out_shape=out_shapes,
        in_specs=[vmem_spec] * (1 + L),
        out_specs=(vmem_spec, vmem_spec),
    )(x, *weights)

    # Unpack the lane-dense slabs back into per-layer traces (outside the kernel).
    mem_rec = [mem_all[:, :, MEM_OFF[l]:MEM_OFF[l] + ARCH[l + 1]] for l in range(L)]
    spk_rec = [spk_all[:, :, SPK_OFF[l]:SPK_OFF[l] + ARCH[l + 1]] for l in range(L - 1)]
    final_mem = mem_rec[-1][-1]           # == PyTorch mem_rec[-1][-1]
    # TODO(synk): PyTorch's spk_rec[0] also contains an all-zero entry for the output layer
    # (ragged structure at t==0); we only record spikes for hidden layers (values identical).
    return final_mem, mem_rec, spk_rec


# ---- pure-JAX reference (mirrors the PyTorch loop) ----------------------------
def dsnn_ref(x, weights):
    syn = [jnp.zeros((BATCH, w.shape[1]), jnp.float32) for w in weights]
    mem = [jnp.zeros((BATCH, w.shape[1]), jnp.float32) for w in weights]
    mem_rec = [[] for _ in range(L)]
    spk_rec = [[] for _ in range(L - 1)]
    for t in range(SIM_TIME):
        if t == 0:
            for l in range(L):
                mem_rec[l].append(mem[l])
            for l in range(L - 1):
                spk_rec[l].append(jnp.zeros_like(mem[l]))
            continue
        prev_spk = None
        for l in range(L):
            if l == 0:
                new_syn = x @ weights[0]
            else:
                new_syn = ALPHA * syn[l] + prev_spk @ weights[l]
            new_mem = BETA * mem[l] + new_syn
            if l < L - 1:
                mthr = new_mem - THRESHOLD
                fired = mthr > 0.0
                spike = fired.astype(jnp.float32)
                new_mem = jnp.where(fired, RESET_POTENTIAL, new_mem)
                spk_rec[l].append(spike)
                prev_spk = spike
            syn[l] = new_syn
            mem[l] = new_mem
            mem_rec[l].append(new_mem)
    mem_rec = [jnp.stack(m, axis=0) for m in mem_rec]
    spk_rec = [jnp.stack(s, axis=0) for s in spk_rec]
    return mem_rec[-1][-1], mem_rec, spk_rec


if __name__ == "__main__":
    key = jax.random.PRNGKey(0)
    keys = jax.random.split(key, L + 1)
    x = jax.random.normal(keys[0], (BATCH, ARCH[0]), dtype=jnp.float32)
    # torch.nn.init.normal_(w, mean=0, std=weight_scale / sqrt(fan_in)), deterministic here.
    weights = [
        jax.random.normal(keys[l + 1], (ARCH[l], ARCH[l + 1]), dtype=jnp.float32)
        * (WEIGHT_SCALE / math.sqrt(ARCH[l]))
        for l in range(L)
    ]

    final_mem, mem_rec, spk_rec = dsnn_forward(x, weights)
    jax.block_until_ready(final_mem)

    ref_final, ref_mem_rec, ref_spk_rec = dsnn_ref(x, weights)
    assert jnp.allclose(final_mem, ref_final, atol=1e-5, rtol=1e-5)
    for a, b in zip(mem_rec, ref_mem_rec):
        assert jnp.allclose(a, b, atol=1e-5, rtol=1e-5)
    for a, b in zip(spk_rec, ref_spk_rec):
        assert jnp.allclose(a, b, atol=1e-5, rtol=1e-5)

    print("KERNEL_OK")
</pallas_src>

<mosaic_0001>
module attributes {stable_mosaic.version = 11 : i64} {
  func.func @dsnn_kernel(%arg0: memref<8x16xf32, #tpu.memory_space<vmem>>, %arg1: memref<16x128xf32, #tpu.memory_space<vmem>>, %arg2: memref<128x128xf32, #tpu.memory_space<vmem>>, %arg3: memref<128x8xf32, #tpu.memory_space<vmem>>, %arg4: memref<6x8x384xf32, #tpu.memory_space<vmem>>, %arg5: memref<6x8x256xf32, #tpu.memory_space<vmem>>) attributes {dimension_semantics = [], scalar_prefetch = 0 : i64, scratch_operands = 0 : i64, tpu.core_type = #tpu.core_type<tc>} {
    %cst = arith.constant 0.000000e+00 : f32
    %0 = vector.broadcast %cst : f32 to vector<8x384xf32>
    %c0 = arith.constant 0 : index
    %c0_0 = arith.constant 0 : index
    %c0_1 = arith.constant 0 : index
    %1 = vector.load %arg4[%c0, %c0_0, %c0_1] : memref<6x8x384xf32, #tpu.memory_space<vmem>>, vector<1x8x384xf32>
    %2 = vector.shape_cast %1 : vector<1x8x384xf32> to vector<8x384xf32>
    %3 = vector.shape_cast %0 : vector<8x384xf32> to vector<1x8x384xf32>
    tpu.vector_store %arg4[%c0, %c0_0, %c0_1], %3 {strides = array<i32>} : memref<6x8x384xf32, #tpu.memory_space<vmem>>, vector<1x8x384xf32>,
    %cst_2 = arith.constant 0.000000e+00 : f32
    %4 = vector.broadcast %cst_2 : f32 to vector<8x256xf32>
    %c0_3 = arith.constant 0 : index
    %c0_4 = arith.constant 0 : index
    %c0_5 = arith.constant 0 : index
    %5 = vector.load %arg5[%c0_3, %c0_4, %c0_5] : memref<6x8x256xf32, #tpu.memory_space<vmem>>, vector<1x8x256xf32>
    %6 = vector.shape_cast %5 : vector<1x8x256xf32> to vector<8x256xf32>
    %7 = vector.shape_cast %4 : vector<8x256xf32> to vector<1x8x256xf32>
    tpu.vector_store %arg5[%c0_3, %c0_4, %c0_5], %7 {strides = array<i32>} : memref<6x8x256xf32, #tpu.memory_space<vmem>>, vector<1x8x256xf32>,
    %c0_6 = arith.constant 0 : index
    %c0_7 = arith.constant 0 : index
    %8 = vector.load %arg0[%c0_6, %c0_7] : memref<8x16xf32, #tpu.memory_space<vmem>>, vector<8x16xf32>
    %c0_8 = arith.constant 0 : index
    %c0_9 = arith.constant 0 : index
    %9 = vector.load %arg1[%c0_8, %c0_9] : memref<16x128xf32, #tpu.memory_space<vmem>>, vector<16x128xf32>
    %cst_10 = arith.constant dense<0.000000e+00> : vector<8x128xf32>
    %10 = tpu.matmul %8, %9, %cst_10 {dimension_numbers = #tpu.dot_dimension_numbers<[1], [0], [0], [1], [0, 0, 1, 1], [], []>} : vector<8x16xf32>, vector<16x128xf32>, vector<8x128xf32> -> vector<8x128xf32>
    %cst_11 = arith.constant 0.000000e+00 : f32
    %11 = vector.broadcast %cst_11 : f32 to vector<8x128xf32>
    %cst_12 = arith.constant 0.000000e+00 : f32
    %12 = vector.broadcast %cst_12 : f32 to vector<8x8xf32>
    %cst_13 = arith.constant 0.000000e+00 : f32
    %13 = vector.broadcast %cst_13 : f32 to vector<8x128xf32>
    %cst_14 = arith.constant 0.000000e+00 : f32
    %14 = vector.broadcast %cst_14 : f32 to vector<8x128xf32>
    %cst_15 = arith.constant 0.000000e+00 : f32
    %15 = vector.broadcast %cst_15 : f32 to vector<8x8xf32>
    %cst_16 = arith.constant 0.899999976 : f32
    %16 = vector.broadcast %cst_16 : f32 to vector<8x128xf32>
    %17 = arith.mulf %16, %13 : vector<8x128xf32>
    %18 = arith.addf %17, %10 : vector<8x128xf32>
    %cst_17 = arith.constant 5.000000e-01 : f32
    %19 = vector.broadcast %cst_17 : f32 to vector<8x128xf32>
    %20 = arith.subf %18, %19 : vector<8x128xf32>
    %cst_18 = arith.constant 0.000000e+00 : f32
    %21 = vector.broadcast %cst_18 : f32 to vector<8x128xf32>
    %22 = arith.cmpf ogt, %20, %21 : vector<8x128xf32>
    %23 = arith.extui %22 : vector<8x128xi1> to vector<8x128xi32>
    %24 = arith.sitofp %23 : vector<8x128xi32> to vector<8x128xf32>
    %cst_19 = arith.constant 0.000000e+00 : f32
    %25 = vector.broadcast %cst_19 : f32 to vector<8x128xf32>
    %26 = arith.select %22, %25, %18 : vector<8x128xi1>, vector<8x128xf32>
    %c1 = arith.constant 1 : index
    %c0_20 = arith.constant 0 : index
    %c0_21 = arith.constant 0 : index
    %27 = vector.load %arg5[%c1, %c0_20, %c0_21] : memref<6x8x256xf32, #tpu.memory_space<vmem>>, vector<1x8x128xf32>
    %28 = vector.shape_cast %27 : vector<1x8x128xf32> to vector<8x128xf32>
    %29 = vector.shape_cast %24 : vector<8x128xf32> to vector<1x8x128xf32>
    tpu.vector_store %arg5[%c1, %c0_20, %c0_21], %29 {strides = array<i32>} : memref<6x8x256xf32, #tpu.memory_space<vmem>>, vector<1x8x128xf32>,
    %c1_22 = arith.constant 1 : index
    %c0_23 = arith.constant 0 : index
    %c0_24 = arith.constant 0 : index
    %30 = vector.load %arg4[%c1_22, %c0_23, %c0_24] : memref<6x8x384xf32, #tpu.memory_space<vmem>>, vector<1x8x128xf32>
    %31 = vector.shape_cast %30 : vector<1x8x128xf32> to vector<8x128xf32>
    %32 = vector.shape_cast %26 : vector<8x128xf32> to vector<1x8x128xf32>
    tpu.vector_store %arg4[%c1_22, %c0_23, %c0_24], %32 {strides = array<i32>} : memref<6x8x384xf32, #tpu.memory_space<vmem>>, vector<1x8x128xf32>,
    %c0_25 = arith.constant 0 : index
    %c0_26 = arith.constant 0 : index
    %33 = vector.load %arg2[%c0_25, %c0_26] : memref<128x128xf32, #tpu.memory_space<vmem>>, vector<128x128xf32>
    %cst_27 = arith.constant dense<0.000000e+00> : vector<8x128xf32>
    %34 = tpu.matmul %24, %33, %cst_27 {dimension_numbers = #tpu.dot_dimension_numbers<[1], [0], [0], [1], [0, 0, 1, 1], [], []>} : vector<8x128xf32>, vector<128x128xf32>, vector<8x128xf32> -> vector<8x128xf32>
    %cst_28 = arith.constant 8.000000e-01 : f32
    %35 = vector.broadcast %cst_28 : f32 to vector<8x128xf32>
    %36 = arith.mulf %35, %11 : vector<8x128xf32>
    %37 = arith.addf %36, %34 : vector<8x128xf32>
    %cst_29 = arith.constant 0.899999976 : f32
    %38 = vector.broadcast %cst_29 : f32 to vector<8x128xf32>
    %39 = arith.mulf %38, %14 : vector<8x128xf32>
    %40 = arith.addf %39, %37 : vector<8x128xf32>
    %cst_30 = arith.constant 5.000000e-01 : f32
    %41 = vector.broadcast %cst_30 : f32 to vector<8x128xf32>
    %42 = arith.subf %40, %41 : vector<8x128xf32>
    %cst_31 = arith.constant 0.000000e+00 : f32
    %43 = vector.broadcast %cst_31 : f32 to vector<8x128xf32>
    %44 = arith.cmpf ogt, %42, %43 : vector<8x128xf32>
    %45 = arith.extui %44 : vector<8x128xi1> to vector<8x128xi32>
    %46 = arith.sitofp %45 : vector<8x128xi32> to vector<8x128xf32>
    %cst_32 = arith.constant 0.000000e+00 : f32
    %47 = vector.broadcast %cst_32 : f32 to vector<8x128xf32>
    %48 = arith.select %44, %47, %40 : vector<8x128xi1>, vector<8x128xf32>
    %c1_33 = arith.constant 1 : index
    %c0_34 = arith.constant 0 : index
    %c128 = arith.constant 128 : index
    %49 = vector.load %arg5[%c1_33, %c0_34, %c128] : memref<6x8x256xf32, #tpu.memory_space<vmem>>, vector<1x8x128xf32>
    %50 = vector.shape_cast %49 : vector<1x8x128xf32> to vector<8x128xf32>
    %51 = vector.shape_cast %46 : vector<8x128xf32> to vector<1x8x128xf32>
    tpu.vector_store %arg5[%c1_33, %c0_34, %c128], %51 {strides = array<i32>} : memref<6x8x256xf32, #tpu.memory_space<vmem>>, vector<1x8x128xf32>,
    %c1_35 = arith.constant 1 : index
    %c0_36 = arith.constant 0 : index
    %c128_37 = arith.constant 128 : index
    %52 = vector.load %arg4[%c1_35, %c0_36, %c128_37] : memref<6x8x384xf32, #tpu.memory_space<vmem>>, vector<1x8x128xf32>
    %53 = vector.shape_cast %52 : vector<1x8x128xf32> to vector<8x128xf32>
    %54 = vector.shape_cast %48 : vector<8x128xf32> to vector<1x8x128xf32>
    tpu.vector_store %arg4[%c1_35, %c0_36, %c128_37], %54 {strides = array<i32>} : memref<6x8x384xf32, #tpu.memory_space<vmem>>, vector<1x8x128xf32>,
    %c0_38 = arith.constant 0 : index
    %c0_39 = arith.constant 0 : index
    %55 = vector.load %arg3[%c0_38, %c0_39] : memref<128x8xf32, #tpu.memory_space<vmem>>, vector<128x8xf32>
    %cst_40 = arith.constant dense<0.000000e+00> : vector<8x8xf32>
    %56 = tpu.matmul %46, %55, %cst_40 {dimension_numbers = #tpu.dot_dimension_numbers<[1], [0], [0], [1], [0, 0, 1, 1], [], []>} : vector<8x128xf32>, vector<128x8xf32>, vector<8x8xf32> -> vector<8x8xf32>
    %cst_41 = arith.constant 8.000000e-01 : f32
    %57 = vector.broadcast %cst_41 : f32 to vector<8x8xf32>
    %58 = arith.mulf %57, %12 : vector<8x8xf32>
    %59 = arith.addf %58, %56 : vector<8x8xf32>
    %cst_42 = arith.constant 0.899999976 : f32
    %60 = vector.broadcast %cst_42 : f32 to vector<8x8xf32>
    %61 = arith.mulf %60, %15 : vector<8x8xf32>
    %62 = arith.addf %61, %59 : vector<8x8xf32>
    %cst_43 = arith.constant 0.000000e+00 : f32
    %63 = vector.broadcast %cst_43 : f32 to vector<8x120xf32>
    %64 = tpu.concatenate %62, %63 in 1 : vector<8x8xf32>, vector<8x120xf32> -> vector<8x128xf32>
    %c1_44 = arith.constant 1 : index
    %c0_45 = arith.constant 0 : index
    %c256 = arith.constant 256 : index
    %65 = vector.load %arg4[%c1_44, %c0_45, %c256] : memref<6x8x384xf32, #tpu.memory_space<vmem>>, vector<1x8x128xf32>
    %66 = vector.shape_cast %65 : vector<1x8x128xf32> to vector<8x128xf32>
    %67 = vector.shape_cast %64 : vector<8x128xf32> to vector<1x8x128xf32>
    tpu.vector_store %arg4[%c1_44, %c0_45, %c256], %67 {strides = array<i32>} : memref<6x8x384xf32, #tpu.memory_space<vmem>>, vector<1x8x128xf32>,
    %cst_46 = arith.constant 0.899999976 : f32
    %68 = vector.broadcast %cst_46 : f32 to vector<8x128xf32>
    %69 = arith.mulf %68, %26 : vector<8x128xf32>
    %70 = arith.addf %69, %10 : vector<8x128xf32>
    %cst_47 = arith.constant 5.000000e-01 : f32
    %71 = vector.broadcast %cst_47 : f32 to vector<8x128xf32>
    %72 = arith.subf %70, %71 : vector<8x128xf32>
    %cst_48 = arith.constant 0.000000e+00 : f32
    %73 = vector.broadcast %cst_48 : f32 to vector<8x128xf32>
    %74 = arith.cmpf ogt, %72, %73 : vector<8x128xf32>
    %75 = arith.extui %74 : vector<8x128xi1> to vector<8x128xi32>
    %76 = arith.sitofp %75 : vector<8x128xi32> to vector<8x128xf32>
    %cst_49 = arith.constant 0.000000e+00 : f32
    %77 = vector.broadcast %cst_49 : f32 to vector<8x128xf32>
    %78 = arith.select %74, %77, %70 : vector<8x128xi1>, vector<8x128xf32>
    %c2 = arith.constant 2 : index
    %c0_50 = arith.constant 0 : index
    %c0_51 = arith.constant 0 : index
    %79 = vector.load %arg5[%c2, %c0_50, %c0_51] : memref<6x8x256xf32, #tpu.memory_space<vmem>>, vector<1x8x128xf32>
    %80 = vector.shape_cast %79 : vector<1x8x128xf32> to vector<8x128xf32>
    %81 = vector.shape_cast %76 : vector<8x128xf32> to vector<1x8x128xf32>
    tpu.vector_store %arg5[%c2, %c0_50, %c0_51], %81 {strides = array<i32>} : memref<6x8x256xf32, #tpu.memory_space<vmem>>, vector<1x8x128xf32>,
    %c2_52 = arith.constant 2 : index
    %c0_53 = arith.constant 0 : index
    %c0_54 = arith.constant 0 : index
    %82 = vector.load %arg4[%c2_52, %c0_53, %c0_54] : memref<6x8x384xf32, #tpu.memory_space<vmem>>, vector<1x8x128xf32>
    %83 = vector.shape_cast %82 : vector<1x8x128xf32> to vector<8x128xf32>
    %84 = vector.shape_cast %78 : vector<8x128xf32> to vector<1x8x128xf32>
    tpu.vector_store %arg4[%c2_52, %c0_53, %c0_54], %84 {strides = array<i32>} : memref<6x8x384xf32, #tpu.memory_space<vmem>>, vector<1x8x128xf32>,
    %c0_55 = arith.constant 0 : index
    %c0_56 = arith.constant 0 : index
    %85 = vector.load %arg2[%c0_55, %c0_56] : memref<128x128xf32, #tpu.memory_space<vmem>>, vector<128x128xf32>
    %cst_57 = arith.constant dense<0.000000e+00> : vector<8x128xf32>
    %86 = tpu.matmul %76, %85, %cst_57 {dimension_numbers = #tpu.dot_dimension_numbers<[1], [0], [0], [1], [0, 0, 1, 1], [], []>} : vector<8x128xf32>, vector<128x128xf32>, vector<8x128xf32> -> vector<8x128xf32>
    %cst_58 = arith.constant 8.000000e-01 : f32
    %87 = vector.broadcast %cst_58 : f32 to vector<8x128xf32>
    %88 = arith.mulf %87, %37 : vector<8x128xf32>
    %89 = arith.addf %88, %86 : vector<8x128xf32>
    %cst_59 = arith.constant 0.899999976 : f32
    %90 = vector.broadcast %cst_59 : f32 to vector<8x128xf32>
    %91 = arith.mulf %90, %48 : vector<8x128xf32>
    %92 = arith.addf %91, %89 : vector<8x128xf32>
    %cst_60 = arith.constant 5.000000e-01 : f32
    %93 = vector.broadcast %cst_60 : f32 to vector<8x128xf32>
    %94 = arith.subf %92, %93 : vector<8x128xf32>
    %cst_61 = arith.constant 0.000000e+00 : f32
    %95 = vector.broadcast %cst_61 : f32 to vector<8x128xf32>
    %96 = arith.cmpf ogt, %94, %95 : vector<8x128xf32>
    %97 = arith.extui %96 : vector<8x128xi1> to vector<8x128xi32>
    %98 = arith.sitofp %97 : vector<8x128xi32> to vector<8x128xf32>
    %cst_62 = arith.constant 0.000000e+00 : f32
    %99 = vector.broadcast %cst_62 : f32 to vector<8x128xf32>
    %100 = arith.select %96, %99, %92 : vector<8x128xi1>, vector<8x128xf32>
    %c2_63 = arith.constant 2 : index
    %c0_64 = arith.constant 0 : index
    %c128_65 = arith.constant 128 : index
    %101 = vector.load %arg5[%c2_63, %c0_64, %c128_65] : memref<6x8x256xf32, #tpu.memory_space<vmem>>, vector<1x8x128xf32>
    %102 = vector.shape_cast %101 : vector<1x8x128xf32> to vector<8x128xf32>
    %103 = vector.shape_cast %98 : vector<8x128xf32> to vector<1x8x128xf32>
    tpu.vector_store %arg5[%c2_63, %c0_64, %c128_65], %103 {strides = array<i32>} : memref<6x8x256xf32, #tpu.memory_space<vmem>>, vector<1x8x128xf32>,
    %c2_66 = arith.constant 2 : index
    %c0_67 = arith.constant 0 : index
    %c128_68 = arith.constant 128 : index
    %104 = vector.load %arg4[%c2_66, %c0_67, %c128_68] : memref<6x8x384xf32, #tpu.memory_space<vmem>>, vector<1x8x128xf32>
    %105 = vector.shape_cast %104 : vector<1x8x128xf32> to vector<8x128xf32>
    %106 = vector.shape_cast %100 : vector<8x128xf32> to vector<1x8x128xf32>
    tpu.vector_store %arg4[%c2_66, %c0_67, %c128_68], %106 {strides = array<i32>} : memref<6x8x384xf32, #tpu.memory_space<vmem>>, vector<1x8x128xf32>,
    %c0_69 = arith.constant 0 : index
    %c0_70 = arith.constant 0 : index
    %107 = vector.load %arg3[%c0_69, %c0_70] : memref<128x8xf32, #tpu.memory_space<vmem>>, vector<128x8xf32>
    %cst_71 = arith.constant dense<0.000000e+00> : vector<8x8xf32>
    %108 = tpu.matmul %98, %107, %cst_71 {dimension_numbers = #tpu.dot_dimension_numbers<[1], [0], [0], [1], [0, 0, 1, 1], [], []>} : vector<8x128xf32>, vector<128x8xf32>, vector<8x8xf32> -> vector<8x8xf32>
    %cst_72 = arith.constant 8.000000e-01 : f32
    %109 = vector.broadcast %cst_72 : f32 to vector<8x8xf32>
    %110 = arith.mulf %109, %59 : vector<8x8xf32>
    %111 = arith.addf %110, %108 : vector<8x8xf32>
    %cst_73 = arith.constant 0.899999976 : f32
    %112 = vector.broadcast %cst_73 : f32 to vector<8x8xf32>
    %113 = arith.mulf %112, %62 : vector<8x8xf32>
    %114 = arith.addf %113, %111 : vector<8x8xf32>
    %cst_74 = arith.constant 0.000000e+00 : f32
    %115 = vector.broadcast %cst_74 : f32 to vector<8x120xf32>
    %116 = tpu.concatenate %114, %115 in 1 : vector<8x8xf32>, vector<8x120xf32> -> vector<8x128xf32>
    %c2_75 = arith.constant 2 : index
    %c0_76 = arith.constant 0 : index
    %c256_77 = arith.constant 256 : index
    %117 = vector.load %arg4[%c2_75, %c0_76, %c256_77] : memref<6x8x384xf32, #tpu.memory_space<vmem>>, vector<1x8x128xf32>
    %118 = vector.shape_cast %117 : vector<1x8x128xf32> to vector<8x128xf32>
    %119 = vector.shape_cast %116 : vector<8x128xf32> to vector<1x8x128xf32>
    tpu.vector_store %arg4[%c2_75, %c0_76, %c256_77], %119 {strides = array<i32>} : memref<6x8x384xf32, #tpu.memory_space<vmem>>, vector<1x8x128xf32>,
    %cst_78 = arith.constant 0.899999976 : f32
    %120 = vector.broadcast %cst_78 : f32 to vector<8x128xf32>
    %121 = arith.mulf %120, %78 : vector<8x128xf32>
    %122 = arith.addf %121, %10 : vector<8x128xf32>
    %cst_79 = arith.constant 5.000000e-01 : f32
    %123 = vector.broadcast %cst_79 : f32 to vector<8x128xf32>
    %124 = arith.subf %122, %123 : vector<8x128xf32>
    %cst_80 = arith.constant 0.000000e+00 : f32
    %125 = vector.broadcast %cst_80 : f32 to vector<8x128xf32>
    %126 = arith.cmpf ogt, %124, %125 : vector<8x128xf32>
    %127 = arith.extui %126 : vector<8x128xi1> to vector<8x128xi32>
    %128 = arith.sitofp %127 : vector<8x128xi32> to vector<8x128xf32>
    %cst_81 = arith.constant 0.000000e+00 : f32
    %129 = vector.broadcast %cst_81 : f32 to vector<8x128xf32>
    %130 = arith.select %126, %129, %122 : vector<8x128xi1>, vector<8x128xf32>
    %c3 = arith.constant 3 : index
    %c0_82 = arith.constant 0 : index
    %c0_83 = arith.constant 0 : index
    %131 = vector.load %arg5[%c3, %c0_82, %c0_83] : memref<6x8x256xf32, #tpu.memory_space<vmem>>, vector<1x8x128xf32>
    %132 = vector.shape_cast %131 : vector<1x8x128xf32> to vector<8x128xf32>
    %133 = vector.shape_cast %128 : vector<8x128xf32> to vector<1x8x128xf32>
    tpu.vector_store %arg5[%c3, %c0_82, %c0_83], %133 {strides = array<i32>} : memref<6x8x256xf32, #tpu.memory_space<vmem>>, vector<1x8x128xf32>,
    %c3_84 = arith.constant 3 : index
    %c0_85 = arith.constant 0 : index
    %c0_86 = arith.constant 0 : index
    %134 = vector.load %arg4[%c3_84, %c0_85, %c0_86] : memref<6x8x384xf32, #tpu.memory_space<vmem>>, vector<1x8x128xf32>
    %135 = vector.shape_cast %134 : vector<1x8x128xf32> to vector<8x128xf32>
    %136 = vector.shape_cast %130 : vector<8x128xf32> to vector<1x8x128xf32>
    tpu.vector_store %arg4[%c3_84, %c0_85, %c0_86], %136 {strides = array<i32>} : memref<6x8x384xf32, #tpu.memory_space<vmem>>, vector<1x8x128xf32>,
    %c0_87 = arith.constant 0 : index
    %c0_88 = arith.constant 0 : index
    %137 = vector.load %arg2[%c0_87, %c0_88] : memref<128x128xf32, #tpu.memory_space<vmem>>, vector<128x128xf32>
    %cst_89 = arith.constant dense<0.000000e+00> : vector<8x128xf32>
    %138 = tpu.matmul %128, %137, %cst_89 {dimension_numbers = #tpu.dot_dimension_numbers<[1], [0], [0], [1], [0, 0, 1, 1], [], []>} : vector<8x128xf32>, vector<128x128xf32>, vector<8x128xf32> -> vector<8x128xf32>
    %cst_90 = arith.constant 8.000000e-01 : f32
    %139 = vector.broadcast %cst_90 : f32 to vector<8x128xf32>
    %140 = arith.mulf %139, %89 : vector<8x128xf32>
    %141 = arith.addf %140, %138 : vector<8x128xf32>
    %cst_91 = arith.constant 0.899999976 : f32
    %142 = vector.broadcast %cst_91 : f32 to vector<8x128xf32>
    %143 = arith.mulf %142, %100 : vector<8x128xf32>
    %144 = arith.addf %143, %141 : vector<8x128xf32>
    %cst_92 = arith.constant 5.000000e-01 : f32
    %145 = vector.broadcast %cst_92 : f32 to vector<8x128xf32>
    %146 = arith.subf %144, %145 : vector<8x128xf32>
    %cst_93 = arith.constant 0.000000e+00 : f32
    %147 = vector.broadcast %cst_93 : f32 to vector<8x128xf32>
    %148 = arith.cmpf ogt, %146, %147 : vector<8x128xf32>
    %149 = arith.extui %148 : vector<8x128xi1> to vector<8x128xi32>
    %150 = arith.sitofp %149 : vector<8x128xi32> to vector<8x128xf32>
    %cst_94 = arith.constant 0.000000e+00 : f32
    %151 = vector.broadcast %cst_94 : f32 to vector<8x128xf32>
    %152 = arith.select %148, %151, %144 : vector<8x128xi1>, vector<8x128xf32>
    %c3_95 = arith.constant 3 : index
    %c0_96 = arith.constant 0 : index
    %c128_97 = arith.constant 128 : index
    %153 = vector.load %arg5[%c3_95, %c0_96, %c128_97] : memref<6x8x256xf32, #tpu.memory_space<vmem>>, vector<1x8x128xf32>
    %154 = vector.shape_cast %153 : vector<1x8x128xf32> to vector<8x128xf32>
    %155 = vector.shape_cast %150 : vector<8x128xf32> to vector<1x8x128xf32>
    tpu.vector_store %arg5[%c3_95, %c0_96, %c128_97], %155 {strides = array<i32>} : memref<6x8x256xf32, #tpu.memory_space<vmem>>, vector<1x8x128xf32>,
    %c3_98 = arith.constant 3 : index
    %c0_99 = arith.constant 0 : index
    %c128_100 = arith.constant 128 : index
    %156 = vector.load %arg4[%c3_98, %c0_99, %c128_100] : memref<6x8x384xf32, #tpu.memory_space<vmem>>, vector<1x8x128xf32>
    %157 = vector.shape_cast %156 : vector<1x8x128xf32> to vector<8x128xf32>
    %158 = vector.shape_cast %152 : vector<8x128xf32> to vector<1x8x128xf32>
    tpu.vector_store %arg4[%c3_98, %c0_99, %c128_100], %158 {strides = array<i32>} : memref<6x8x384xf32, #tpu.memory_space<vmem>>, vector<1x8x128xf32>,
    %c0_101 = arith.constant 0 : index
    %c0_102 = arith.constant 0 : index
    %159 = vector.load %arg3[%c0_101, %c0_102] : memref<128x8xf32, #tpu.memory_space<vmem>>, vector<128x8xf32>
    %cst_103 = arith.constant dense<0.000000e+00> : vector<8x8xf32>
    %160 = tpu.matmul %150, %159, %cst_103 {dimension_numbers = #tpu.dot_dimension_numbers<[1], [0], [0], [1], [0, 0, 1, 1], [], []>} : vector<8x128xf32>, vector<128x8xf32>, vector<8x8xf32> -> vector<8x8xf32>
    %cst_104 = arith.constant 8.000000e-01 : f32
    %161 = vector.broadcast %cst_104 : f32 to vector<8x8xf32>
    %162 = arith.mulf %161, %111 : vector<8x8xf32>
    %163 = arith.addf %162, %160 : vector<8x8xf32>
    %cst_105 = arith.constant 0.899999976 : f32
    %164 = vector.broadcast %cst_105 : f32 to vector<8x8xf32>
    %165 = arith.mulf %164, %114 : vector<8x8xf32>
    %166 = arith.addf %165, %163 : vector<8x8xf32>
    %cst_106 = arith.constant 0.000000e+00 : f32
    %167 = vector.broadcast %cst_106 : f32 to vector<8x120xf32>
    %168 = tpu.concatenate %166, %167 in 1 : vector<8x8xf32>, vector<8x120xf32> -> vector<8x128xf32>
    %c3_107 = arith.constant 3 : index
    %c0_108 = arith.constant 0 : index
    %c256_109 = arith.constant 256 : index
    %169 = vector.load %arg4[%c3_107, %c0_108, %c256_109] : memref<6x8x384xf32, #tpu.memory_space<vmem>>, vector<1x8x128xf32>
    %170 = vector.shape_cast %169 : vector<1x8x128xf32> to vector<8x128xf32>
    %171 = vector.shape_cast %168 : vector<8x128xf32> to vector<1x8x128xf32>
    tpu.vector_store %arg4[%c3_107, %c0_108, %c256_109], %171 {strides = array<i32>} : memref<6x8x384xf32, #tpu.memory_space<vmem>>, vector<1x8x128xf32>,
    %cst_110 = arith.constant 0.899999976 : f32
    %172 = vector.broadcast %cst_110 : f32 to vector<8x128xf32>
    %173 = arith.mulf %172, %130 : vector<8x128xf32>
    %174 = arith.addf %173, %10 : vector<8x128xf32>
    %cst_111 = arith.constant 5.000000e-01 : f32
    %175 = vector.broadcast %cst_111 : f32 to vector<8x128xf32>
    %176 = arith.subf %174, %175 : vector<8x128xf32>
    %cst_112 = arith.constant 0.000000e+00 : f32
    %177 = vector.broadcast %cst_112 : f32 to vector<8x128xf32>
    %178 = arith.cmpf ogt, %176, %177 : vector<8x128xf32>
    %179 = arith.extui %178 : vector<8x128xi1> to vector<8x128xi32>
    %180 = arith.sitofp %179 : vector<8x128xi32> to vector<8x128xf32>
    %cst_113 = arith.constant 0.000000e+00 : f32
    %181 = vector.broadcast %cst_113 : f32 to vector<8x128xf32>
    %182 = arith.select %178, %181, %174 : vector<8x128xi1>, vector<8x128xf32>
    %c4 = arith.constant 4 : index
    %c0_114 = arith.constant 0 : index
    %c0_115 = arith.constant 0 : index
    %183 = vector.load %arg5[%c4, %c0_114, %c0_115] : memref<6x8x256xf32, #tpu.memory_space<vmem>>, vector<1x8x128xf32>
    %184 = vector.shape_cast %183 : vector<1x8x128xf32> to vector<8x128xf32>
    %185 = vector.shape_cast %180 : vector<8x128xf32> to vector<1x8x128xf32>
    tpu.vector_store %arg5[%c4, %c0_114, %c0_115], %185 {strides = array<i32>} : memref<6x8x256xf32, #tpu.memory_space<vmem>>, vector<1x8x128xf32>,
    %c4_116 = arith.constant 4 : index
    %c0_117 = arith.constant 0 : index
    %c0_118 = arith.constant 0 : index
    %186 = vector.load %arg4[%c4_116, %c0_117, %c0_118] : memref<6x8x384xf32, #tpu.memory_space<vmem>>, vector<1x8x128xf32>
    %187 = vector.shape_cast %186 : vector<1x8x128xf32> to vector<8x128xf32>
    %188 = vector.shape_cast %182 : vector<8x128xf32> to vector<1x8x128xf32>
    tpu.vector_store %arg4[%c4_116, %c0_117, %c0_118], %188 {strides = array<i32>} : memref<6x8x384xf32, #tpu.memory_space<vmem>>, vector<1x8x128xf32>,
    %c0_119 = arith.constant 0 : index
    %c0_120 = arith.constant 0 : index
    %189 = vector.load %arg2[%c0_119, %c0_120] : memref<128x128xf32, #tpu.memory_space<vmem>>, vector<128x128xf32>
    %cst_121 = arith.constant dense<0.000000e+00> : vector<8x128xf32>
    %190 = tpu.matmul %180, %189, %cst_121 {dimension_numbers = #tpu.dot_dimension_numbers<[1], [0], [0], [1], [0, 0, 1, 1], [], []>} : vector<8x128xf32>, vector<128x128xf32>, vector<8x128xf32> -> vector<8x128xf32>
    %cst_122 = arith.constant 8.000000e-01 : f32
    %191 = vector.broadcast %cst_122 : f32 to vector<8x128xf32>
    %192 = arith.mulf %191, %141 : vector<8x128xf32>
    %193 = arith.addf %192, %190 : vector<8x128xf32>
    %cst_123 = arith.constant 0.899999976 : f32
    %194 = vector.broadcast %cst_123 : f32 to vector<8x128xf32>
    %195 = arith.mulf %194, %152 : vector<8x128xf32>
    %196 = arith.addf %195, %193 : vector<8x128xf32>
    %cst_124 = arith.constant 5.000000e-01 : f32
    %197 = vector.broadcast %cst_124 : f32 to vector<8x128xf32>
    %198 = arith.subf %196, %197 : vector<8x128xf32>
    %cst_125 = arith.constant 0.000000e+00 : f32
    %199 = vector.broadcast %cst_125 : f32 to vector<8x128xf32>
    %200 = arith.cmpf ogt, %198, %199 : vector<8x128xf32>
    %201 = arith.extui %200 : vector<8x128xi1> to vector<8x128xi32>
    %202 = arith.sitofp %201 : vector<8x128xi32> to vector<8x128xf32>
    %cst_126 = arith.constant 0.000000e+00 : f32
    %203 = vector.broadcast %cst_126 : f32 to vector<8x128xf32>
    %204 = arith.select %200, %203, %196 : vector<8x128xi1>, vector<8x128xf32>
    %c4_127 = arith.constant 4 : index
    %c0_128 = arith.constant 0 : index
    %c128_129 = arith.constant 128 : index
    %205 = vector.load %arg5[%c4_127, %c0_128, %c128_129] : memref<6x8x256xf32, #tpu.memory_space<vmem>>, vector<1x8x128xf32>
    %206 = vector.shape_cast %205 : vector<1x8x128xf32> to vector<8x128xf32>
    %207 = vector.shape_cast %202 : vector<8x128xf32> to vector<1x8x128xf32>
    tpu.vector_store %arg5[%c4_127, %c0_128, %c128_129], %207 {strides = array<i32>} : memref<6x8x256xf32, #tpu.memory_space<vmem>>, vector<1x8x128xf32>,
    %c4_130 = arith.constant 4 : index
    %c0_131 = arith.constant 0 : index
    %c128_132 = arith.constant 128 : index
    %208 = vector.load %arg4[%c4_130, %c0_131, %c128_132] : memref<6x8x384xf32, #tpu.memory_space<vmem>>, vector<1x8x128xf32>
    %209 = vector.shape_cast %208 : vector<1x8x128xf32> to vector<8x128xf32>
    %210 = vector.shape_cast %204 : vector<8x128xf32> to vector<1x8x128xf32>
    tpu.vector_store %arg4[%c4_130, %c0_131, %c128_132], %210 {strides = array<i32>} : memref<6x8x384xf32, #tpu.memory_space<vmem>>, vector<1x8x128xf32>,
    %c0_133 = arith.constant 0 : index
    %c0_134 = arith.constant 0 : index
    %211 = vector.load %arg3[%c0_133, %c0_134] : memref<128x8xf32, #tpu.memory_space<vmem>>, vector<128x8xf32>
    %cst_135 = arith.constant dense<0.000000e+00> : vector<8x8xf32>
    %212 = tpu.matmul %202, %211, %cst_135 {dimension_numbers = #tpu.dot_dimension_numbers<[1], [0], [0], [1], [0, 0, 1, 1], [], []>} : vector<8x128xf32>, vector<128x8xf32>, vector<8x8xf32> -> vector<8x8xf32>
    %cst_136 = arith.constant 8.000000e-01 : f32
    %213 = vector.broadcast %cst_136 : f32 to vector<8x8xf32>
    %214 = arith.mulf %213, %163 : vector<8x8xf32>
    %215 = arith.addf %214, %212 : vector<8x8xf32>
    %cst_137 = arith.constant 0.899999976 : f32
    %216 = vector.broadcast %cst_137 : f32 to vector<8x8xf32>
    %217 = arith.mulf %216, %166 : vector<8x8xf32>
    %218 = arith.addf %217, %215 : vector<8x8xf32>
    %cst_138 = arith.constant 0.000000e+00 : f32
    %219 = vector.broadcast %cst_138 : f32 to vector<8x120xf32>
    %220 = tpu.concatenate %218, %219 in 1 : vector<8x8xf32>, vector<8x120xf32> -> vector<8x128xf32>
    %c4_139 = arith.constant 4 : index
    %c0_140 = arith.constant 0 : index
    %c256_141 = arith.constant 256 : index
    %221 = vector.load %arg4[%c4_139, %c0_140, %c256_141] : memref<6x8x384xf32, #tpu.memory_space<vmem>>, vector<1x8x128xf32>
    %222 = vector.shape_cast %221 : vector<1x8x128xf32> to vector<8x128xf32>
    %223 = vector.shape_cast %220 : vector<8x128xf32> to vector<1x8x128xf32>
    tpu.vector_store %arg4[%c4_139, %c0_140, %c256_141], %223 {strides = array<i32>} : memref<6x8x384xf32, #tpu.memory_space<vmem>>, vector<1x8x128xf32>,
    %cst_142 = arith.constant 0.899999976 : f32
    %224 = vector.broadcast %cst_142 : f32 to vector<8x128xf32>
    %225 = arith.mulf %224, %182 : vector<8x128xf32>
    %226 = arith.addf %225, %10 : vector<8x128xf32>
    %cst_143 = arith.constant 5.000000e-01 : f32
    %227 = vector.broadcast %cst_143 : f32 to vector<8x128xf32>
    %228 = arith.subf %226, %227 : vector<8x128xf32>
    %cst_144 = arith.constant 0.000000e+00 : f32
    %229 = vector.broadcast %cst_144 : f32 to vector<8x128xf32>
    %230 = arith.cmpf ogt, %228, %229 : vector<8x128xf32>
    %231 = arith.extui %230 : vector<8x128xi1> to vector<8x128xi32>
    %232 = arith.sitofp %231 : vector<8x128xi32> to vector<8x128xf32>
    %cst_145 = arith.constant 0.000000e+00 : f32
    %233 = vector.broadcast %cst_145 : f32 to vector<8x128xf32>
    %234 = arith.select %230, %233, %226 : vector<8x128xi1>, vector<8x128xf32>
    %c5 = arith.constant 5 : index
    %c0_146 = arith.constant 0 : index
    %c0_147 = arith.constant 0 : index
    %235 = vector.load %arg5[%c5, %c0_146, %c0_147] : memref<6x8x256xf32, #tpu.memory_space<vmem>>, vector<1x8x128xf32>
    %236 = vector.shape_cast %235 : vector<1x8x128xf32> to vector<8x128xf32>
    %237 = vector.shape_cast %232 : vector<8x128xf32> to vector<1x8x128xf32>
    tpu.vector_store %arg5[%c5, %c0_146, %c0_147], %237 {strides = array<i32>} : memref<6x8x256xf32, #tpu.memory_space<vmem>>, vector<1x8x128xf32>,
    %c5_148 = arith.constant 5 : index
    %c0_149 = arith.constant 0 : index
    %c0_150 = arith.constant 0 : index
    %238 = vector.load %arg4[%c5_148, %c0_149, %c0_150] : memref<6x8x384xf32, #tpu.memory_space<vmem>>, vector<1x8x128xf32>
    %239 = vector.shape_cast %238 : vector<1x8x128xf32> to vector<8x128xf32>
    %240 = vector.shape_cast %234 : vector<8x128xf32> to vector<1x8x128xf32>
    tpu.vector_store %arg4[%c5_148, %c0_149, %c0_150], %240 {strides = array<i32>} : memref<6x8x384xf32, #tpu.memory_space<vmem>>, vector<1x8x128xf32>,
    %c0_151 = arith.constant 0 : index
    %c0_152 = arith.constant 0 : index
    %241 = vector.load %arg2[%c0_151, %c0_152] : memref<128x128xf32, #tpu.memory_space<vmem>>, vector<128x128xf32>
    %cst_153 = arith.constant dense<0.000000e+00> : vector<8x128xf32>
    %242 = tpu.matmul %232, %241, %cst_153 {dimension_numbers = #tpu.dot_dimension_numbers<[1], [0], [0], [1], [0, 0, 1, 1], [], []>} : vector<8x128xf32>, vector<128x128xf32>, vector<8x128xf32> -> vector<8x128xf32>
    %cst_154 = arith.constant 8.000000e-01 : f32
    %243 = vector.broadcast %cst_154 : f32 to vector<8x128xf32>
    %244 = arith.mulf %243, %193 : vector<8x128xf32>
    %245 = arith.addf %244, %242 : vector<8x128xf32>
    %cst_155 = arith.constant 0.899999976 : f32
    %246 = vector.broadcast %cst_155 : f32 to vector<8x128xf32>
    %247 = arith.mulf %246, %204 : vector<8x128xf32>
    %248 = arith.addf %247, %245 : vector<8x128xf32>
    %cst_156 = arith.constant 5.000000e-01 : f32
    %249 = vector.broadcast %cst_156 : f32 to vector<8x128xf32>
    %250 = arith.subf %248, %249 : vector<8x128xf32>
    %cst_157 = arith.constant 0.000000e+00 : f32
    %251 = vector.broadcast %cst_157 : f32 to vector<8x128xf32>
    %252 = arith.cmpf ogt, %250, %251 : vector<8x128xf32>
    %253 = arith.extui %252 : vector<8x128xi1> to vector<8x128xi32>
    %254 = arith.sitofp %253 : vector<8x128xi32> to vector<8x128xf32>
    %cst_158 = arith.constant 0.000000e+00 : f32
    %255 = vector.broadcast %cst_158 : f32 to vector<8x128xf32>
    %256 = arith.select %252, %255, %248 : vector<8x128xi1>, vector<8x128xf32>
    %c5_159 = arith.constant 5 : index
    %c0_160 = arith.constant 0 : index
    %c128_161 = arith.constant 128 : index
    %257 = vector.load %arg5[%c5_159, %c0_160, %c128_161] : memref<6x8x256xf32, #tpu.memory_space<vmem>>, vector<1x8x128xf32>
    %258 = vector.shape_cast %257 : vector<1x8x128xf32> to vector<8x128xf32>
    %259 = vector.shape_cast %254 : vector<8x128xf32> to vector<1x8x128xf32>
    tpu.vector_store %arg5[%c5_159, %c0_160, %c128_161], %259 {strides = array<i32>} : memref<6x8x256xf32, #tpu.memory_space<vmem>>, vector<1x8x128xf32>,
    %c5_162 = arith.constant 5 : index
    %c0_163 = arith.constant 0 : index
    %c128_164 = arith.constant 128 : index
    %260 = vector.load %arg4[%c5_162, %c0_163, %c128_164] : memref<6x8x384xf32, #tpu.memory_space<vmem>>, vector<1x8x128xf32>
    %261 = vector.shape_cast %260 : vector<1x8x128xf32> to vector<8x128xf32>
    %262 = vector.shape_cast %256 : vector<8x128xf32> to vector<1x8x128xf32>
    tpu.vector_store %arg4[%c5_162, %c0_163, %c128_164], %262 {strides = array<i32>} : memref<6x8x384xf32, #tpu.memory_space<vmem>>, vector<1x8x128xf32>,
    %c0_165 = arith.constant 0 : index
    %c0_166 = arith.constant 0 : index
    %263 = vector.load %arg3[%c0_165, %c0_166] : memref<128x8xf32, #tpu.memory_space<vmem>>, vector<128x8xf32>
    %cst_167 = arith.constant dense<0.000000e+00> : vector<8x8xf32>
    %264 = tpu.matmul %254, %263, %cst_167 {dimension_numbers = #tpu.dot_dimension_numbers<[1], [0], [0], [1], [0, 0, 1, 1], [], []>} : vector<8x128xf32>, vector<128x8xf32>, vector<8x8xf32> -> vector<8x8xf32>
    %cst_168 = arith.constant 8.000000e-01 : f32
    %265 = vector.broadcast %cst_168 : f32 to vector<8x8xf32>
    %266 = arith.mulf %265, %215 : vector<8x8xf32>
    %267 = arith.addf %266, %264 : vector<8x8xf32>
    %cst_169 = arith.constant 0.899999976 : f32
    %268 = vector.broadcast %cst_169 : f32 to vector<8x8xf32>
    %269 = arith.mulf %268, %218 : vector<8x8xf32>
    %270 = arith.addf %269, %267 : vector<8x8xf32>
    %cst_170 = arith.constant 0.000000e+00 : f32
    %271 = vector.broadcast %cst_170 : f32 to vector<8x120xf32>
    %272 = tpu.concatenate %270, %271 in 1 : vector<8x8xf32>, vector<8x120xf32> -> vector<8x128xf32>
    %c5_171 = arith.constant 5 : index
    %c0_172 = arith.constant 0 : index
    %c256_173 = arith.constant 256 : index
    %273 = vector.load %arg4[%c5_171, %c0_172, %c256_173] : memref<6x8x384xf32, #tpu.memory_space<vmem>>, vector<1x8x128xf32>
    %274 = vector.shape_cast %273 : vector<1x8x128xf32> to vector<8x128xf32>
    %275 = vector.shape_cast %272 : vector<8x128xf32> to vector<1x8x128xf32>
    tpu.vector_store %arg4[%c5_171, %c0_172, %c256_173], %275 {strides = array<i32>} : memref<6x8x384xf32, #tpu.memory_space<vmem>>, vector<1x8x128xf32>,
    return
  }
}

</mosaic_0001>

<llo_original>
// kernel: tpu_custom_call.1
$region0: #{tpu_custom_call.1}
  #allocation0 [shape = 'u32[]', space=smem, size = 0x4, offset = 0x4, fixed_abs, tag = 'smem constant byte address 0x4 - core index']
  #allocation1 [shape = 'u32[144,128]{1,0:T(1,128)}', space=vmem, size = 0x12000, scoped, tag = 'internal scratch']
  %s0 = inlined_call_operand.vmem [shape: f32[8,16], index: 0, kind: input, shape index: {}]
  %s1 = inlined_call_operand.hbm [shape: f32[16,128], index: 1, kind: input, shape index: {}]
  %s2 = inlined_call_operand.vmem [shape: f32[128,128], index: 2, kind: input, shape index: {}]
  %s3 = inlined_call_operand.vmem [shape: f32[128,8], index: 3, kind: input, shape index: {}]
  %s4 = inlined_call_operand.hbm [shape: f32[6,8,384], index: 4, kind: output, shape index: {0}]
  %s5 = inlined_call_operand.hbm [shape: f32[6,8,256], index: 5, kind: output, shape index: {1}]
  %6 = xla_tuple %s4, %s5
  %s7 = sld [smem:[#allocation0]]
  $region38: #{tpu_custom_call.1} parent=0
    _
  %s9 = ssub.s32 1, %s7
  %s10 = scalar_select 0, %s9, %s7
  $region1: #{tpu_custom_call.1} parent=0
    #allocation2 [shape = 'u8[8192]{0}', space=vmem, size = 0x2000, scoped, tag = 'input window, operand 1, single buffered']
    #allocation3 [shape = 's32[1]{0}', space=sflag, size = 0x4, scoped, tag = 'scoped memory for tpu_custom_call.1']
    #allocation4 [shape = 's32[1]{0}', space=sflag, size = 0x4, scoped, tag = 'scoped memory for tpu_custom_call.1']
    #allocation5 [shape = 'u8[73728]{0}', space=vmem, size = 0x12000, scoped, tag = 'output window, operand 0, single buffered']
    #allocation6 [shape = 'u8[49152]{0}', space=vmem, size = 0xc000, scoped, tag = 'output window, operand 1, single buffered']
    #allocation7 [shape = 's32[1]{0}', space=sflag, size = 0x4, scoped, tag = 'scoped memory for tpu_custom_call.1']
    %11 = vsyncpa [#allocation3], 0
    %12 = vsyncpa [#allocation4], 0
    %13 = vsyncpa [#allocation7], 0
    // Predicated region
    $region2: #{tpu_custom_call.1} parent=1 // pred_check
      _
    $region3: #{tpu_custom_call.1} parent=1 // pred_check_branch
      %15 = sbr.rel (0) target = $region5
    $region4: #{tpu_custom_call.1} parent=1 // pred_region
      _
    $region5: #{tpu_custom_call.1} parent=1 // pred_fallthru
      _
    // Predicated region
    $region6: #{tpu_custom_call.1} parent=1 // pred_check
      _
    $region7: #{tpu_custom_call.1} parent=1 // pred_check_branch
      %17 = sbr.rel (0) target = $region9
    $region8: #{tpu_custom_call.1} parent=1 // pred_region
      %s19 = ssub.s32 256, 256
      %20 = vsyncadd [#allocation3], %s19
      %s21 = sshll.u32 [#allocation2], 4
      %s22 = int_to_ptr.vmem [resolvable:$true] %s21
      %27 = dma.hbm_to_vmem [thread:$0]  %s1, 256, %s22, [#allocation3], 128, 128, 8
    $region9: #{tpu_custom_call.1} parent=1 // pred_fallthru
      _
    // Predicated region
    $region10: #{tpu_custom_call.1} parent=1 // pred_check
      _
    $region11: #{tpu_custom_call.1} parent=1 // pred_check_branch
      %29 = sbr.rel (0) target = $region13
    $region12: #{tpu_custom_call.1} parent=1 // pred_region
      _
    $region13: #{tpu_custom_call.1} parent=1 // pred_fallthru
      _
    // Predicated region
    $region14: #{tpu_custom_call.1} parent=1 // pred_check
      _
    $region15: #{tpu_custom_call.1} parent=1 // pred_check_branch
      %31 = sbr.rel (0) target = $region17
    $region16: #{tpu_custom_call.1} parent=1 // pred_region
      _
    $region17: #{tpu_custom_call.1} parent=1 // pred_fallthru
      _
    // Predicated region
    $region18: #{tpu_custom_call.1} parent=1 // pred_check
      _
    $region19: #{tpu_custom_call.1} parent=1 // pred_check_branch
      %33 = sbr.rel (0) target = $region21
    $region20: #{tpu_custom_call.1} parent=1 // pred_region
      %34 = dma.done [#allocation3], 256
    $region21: #{tpu_custom_call.1} parent=1 // pred_fallthru
      _
    %35 = vst [vmem:[#allocation5] sm:$0xff] 0.0
    %36 = vst [vmem:[#allocation5 + $0x8] sm:$0xff] 0.0
    %37 = vst [vmem:[#allocation5 + $0x10] sm:$0xff] 0.0
    %38 = vst [vmem:[#allocation6] sm:$0xff] 0.0
    %39 = vst [vmem:[#allocation6 + $0x8] sm:$0xff] 0.0
    %v40 = vld [vmem:[%s0] sm:$0xff]
    %v41 = vld [vmem:[#allocation2] sm:$0xff]
    %v42 = vld [vmem:[#allocation2 + $0x8] sm:$0xff]
    %vm43 = vcmask 130048
    %v45 = vsel %vm43, %v40, 0
    %47 = vmatprep.subr.mxu0 0.0
    %48 = vmatpush1.msra.mxu0 %v41
    %49 = vmatprep.subr.mxu0 0.0
    %50 = vmatpush1.msra.mxu0 %v42
    %51 = vmatprep.subr.mxu0 0.0
    %52 = vmatpush1.msra.mxu0 0.0
    %53 = vmatprep.subr.mxu0 0.0
    %54 = vmatpush1.msra.mxu0 0.0
    %55 = vmatprep.subr.mxu0 0.0
    %56 = vmatpush1.msra.mxu0 0.0
    %57 = vmatprep.subr.mxu0 0.0
    %58 = vmatpush1.msra.mxu0 0.0
    %59 = vmatprep.subr.mxu0 0.0
    %60 = vmatpush1.msra.mxu0 0.0
    %61 = vmatprep.subr.mxu0 0.0
    %62 = vmatpush1.msra.mxu0 0.0
    %63 = vmatprep.subr.mxu0 0.0
    %64 = vmatpush1.msra.mxu0 0.0
    %65 = vmatprep.subr.mxu0 0.0
    %66 = vmatpush1.msra.mxu0 0.0
    %67 = vmatprep.subr.mxu0 0.0
    %68 = vmatpush1.msra.mxu0 0.0
    %69 = vmatprep.subr.mxu0 0.0
    %70 = vmatpush1.msra.mxu0 0.0
    %71 = vmatprep.subr.mxu0 0.0
    %72 = vmatpush1.msra.mxu0 0.0
    %73 = vmatprep.subr.mxu0 0.0
    %74 = vmatpush1.msra.mxu0 0.0
    %75 = vmatprep.subr.mxu0 0.0
    %76 = vmatpush1.msra.mxu0 0.0
    %77 = vmatprep.subr.mxu0 0.0
    %78 = vmatpush1.msra.mxu0 0.0
    %79 = vmatprep.subr.mxu0 0.0
    %80 = vmatpush1.msra.mxu0 0.0
    %81 = vmatprep.subr.mxu0 0.0
    %82 = vmatpush1.msra.mxu0 0.0
    %83 = vmatprep.subr.mxu0 0.0
    %84 = vmatpush1.msra.mxu0 0.0
    %85 = vmatprep.subr.mxu0 0.0
    %86 = vmatpush1.msra.mxu0 0.0
    %87 = vmatprep.subr.mxu0 0.0
    %88 = vmatpush1.msra.mxu0 0.0
    %89 = vmatprep.subr.mxu0 0.0
    %90 = vmatpush1.msra.mxu0 0.0
    %91 = vmatprep.subr.mxu0 0.0
    %92 = vmatpush1.msra.mxu0 0.0
    %93 = vmatprep.subr.mxu0 0.0
    %94 = vmatpush1.msra.mxu0 0.0
    %95 = vmatprep.subr.mxu0 0.0
    %96 = vmatpush1.msra.mxu0 0.0
    %97 = vmatprep.subr.mxu0 0.0
    %98 = vmatpush1.msra.mxu0 0.0
    %99 = vmatprep.subr.mxu0 0.0
    %100 = vmatpush1.msra.mxu0 0.0
    %101 = vmatprep.subr.mxu0 0.0
    %102 = vmatpush1.msra.mxu0 0.0
    %103 = vmatprep.subr.mxu0 0.0
    %104 = vmatpush1.msra.mxu0 0.0
    %105 = vmatprep.subr.mxu0 0.0
    %106 = vmatpush1.msra.mxu0 0.0
    %107 = vmatprep.subr.mxu0 0.0
    %108 = vmatpush1.msra.mxu0 0.0
    %109 = vmatprep.subr.mxu0 0.0
    %110 = vmatpush1.msra.mxu0 0.0
    %111 = vmatprep.mubr.f32.mxu0 0.0
    %112 = vmatmul.mubr.f32.gmra.mrb[0].mxu0 %v45
    %v113 = vpop.f32.mrb[0].mxu0
    %v114 = vadd.f32 0.0, %v113
    %v115 = vpop.f32.mrb[0].mxu0
    %116 = vdwg.mxu0
    %v117 = vadd.f32 %v114, 0.0
    %v118 = vsub.f32 %v117, 0.5
    %vm119 = vcmp.gt.f32.partialorder %v118, 0.0
    %v120 = vsel %vm119, 1, 0
    %v121 = vcvt.s32.f32 %v120
    %v122 = vsel %vm119, 0.0, %v117
    %s123 = scalar_lea.vmem [#allocation6], 16
    %124 = vst [vmem:[%s123] sm:$0xff] %v121
    %s125 = scalar_lea.vmem [#allocation5], 24
    %126 = vst [vmem:[%s125] sm:$0xff] %v122
    %v127 = vld [vmem:[%s2] sm:$0xff]
    %v128 = vld [vmem:[%s2 + $0x8] sm:$0xff]
    %v129 = vld [vmem:[%s2 + $0x10] sm:$0xff]
    %v130 = vld [vmem:[%s2 + $0x18] sm:$0xff]
    %v131 = vld [vmem:[%s2 + $0x20] sm:$0xff]
    %v132 = vld [vmem:[%s2 + $0x28] sm:$0xff]
    %v133 = vld [vmem:[%s2 + $0x30] sm:$0xff]
    %v134 = vld [vmem:[%s2 + $0x38] sm:$0xff]
    %v135 = vld [vmem:[%s2 + $0x40] sm:$0xff]
    %v136 = vld [vmem:[%s2 + $0x48] sm:$0xff]
    %v137 = vld [vmem:[%s2 + $0x50] sm:$0xff]
    %v138 = vld [vmem:[%s2 + $0x58] sm:$0xff]
    %v139 = vld [vmem:[%s2 + $0x60] sm:$0xff]
    %v140 = vld [vmem:[%s2 + $0x68] sm:$0xff]
    %v141 = vld [vmem:[%s2 + $0x70] sm:$0xff]
    %v142 = vld [vmem:[%s2 + $0x78] sm:$0xff]
    %143 = vmatprep.subr.mxu0 0.0
    %144 = vmatpush1.msra.mxu0 %v127
    %145 = vmatprep.subr.mxu0 0.0
    %146 = vmatpush1.msra.mxu0 %v128
    %147 = vmatprep.subr.mxu0 0.0
    %148 = vmatpush1.msra.mxu0 %v129
    %149 = vmatprep.subr.mxu0 0.0
    %150 = vmatpush1.msra.mxu0 %v130
    %151 = vmatprep.subr.mxu0 0.0
    %152 = vmatpush1.msra.mxu0 %v131
    %153 = vmatprep.subr.mxu0 0.0
    %154 = vmatpush1.msra.mxu0 %v132
    %155 = vmatprep.subr.mxu0 0.0
    %156 = vmatpush1.msra.mxu0 %v133
    %157 = vmatprep.subr.mxu0 0.0
    %158 = vmatpush1.msra.mxu0 %v134
    %159 = vmatprep.subr.mxu0 0.0
    %160 = vmatpush1.msra.mxu0 %v135
    %161 = vmatprep.subr.mxu0 0.0
    %162 = vmatpush1.msra.mxu0 %v136
    %163 = vmatprep.subr.mxu0 0.0
    %164 = vmatpush1.msra.mxu0 %v137
    %165 = vmatprep.subr.mxu0 0.0
    %166 = vmatpush1.msra.mxu0 %v138
    %167 = vmatprep.subr.mxu0 0.0
    %168 = vmatpush1.msra.mxu0 %v139
    %169 = vmatprep.subr.mxu0 0.0
    %170 = vmatpush1.msra.mxu0 %v140
    %171 = vmatprep.subr.mxu0 0.0
    %172 = vmatpush1.msra.mxu0 %v141
    %173 = vmatprep.subr.mxu0 0.0
    %174 = vmatpush1.msra.mxu0 %v142
    %175 = vmatprep.subr.mxu0 0.0
    %176 = vmatpush1.msra.mxu0 0.0
    %177 = vmatprep.subr.mxu0 0.0
    %178 = vmatpush1.msra.mxu0 0.0
    %179 = vmatprep.subr.mxu0 0.0
    %180 = vmatpush1.msra.mxu0 0.0
    %181 = vmatprep.subr.mxu0 0.0
    %182 = vmatpush1.msra.mxu0 0.0
    %183 = vmatprep.subr.mxu0 0.0
    %184 = vmatpush1.msra.mxu0 0.0
    %185 = vmatprep.subr.mxu0 0.0
    %186 = vmatpush1.msra.mxu0 0.0
    %187 = vmatprep.subr.mxu0 0.0
    %188 = vmatpush1.msra.mxu0 0.0
    %189 = vmatprep.subr.mxu0 0.0
    %190 = vmatpush1.msra.mxu0 0.0
    %191 = vmatprep.subr.mxu0 0.0
    %192 = vmatpush1.msra.mxu0 0.0
    %193 = vmatprep.subr.mxu0 0.0
    %194 = vmatpush1.msra.mxu0 0.0
    %195 = vmatprep.subr.mxu0 0.0
    %196 = vmatpush1.msra.mxu0 0.0
    %197 = vmatprep.subr.mxu0 0.0
    %198 = vmatpush1.msra.mxu0 0.0
    %199 = vmatprep.subr.mxu0 0.0
    %200 = vmatpush1.msra.mxu0 0.0
    %201 = vmatprep.subr.mxu0 0.0
    %202 = vmatpush1.msra.mxu0 0.0
    %203 = vmatprep.subr.mxu0 0.0
    %204 = vmatpush1.msra.mxu0 0.0
    %205 = vmatprep.subr.mxu0 0.0
    %206 = vmatpush1.msra.mxu0 0.0
    %207 = vmatprep.mubr.f32.mxu0 0.0
    %208 = vmatmul.mubr.f32.gmra.mrb[0].mxu0 %v121
    %v209 = vpop.f32.mrb[0].mxu0
    %v210 = vadd.f32 0.0, %v209
    %v211 = vpop.f32.mrb[0].mxu0
    %212 = vdwg.mxu0
    %v213 = vadd.f32 %v210, 0.0
    %v214 = vsub.f32 %v213, 0.5
    %vm215 = vcmp.gt.f32.partialorder %v214, 0.0
    %v216 = vsel %vm215, 1, 0
    %v217 = vcvt.s32.f32 %v216
    %v218 = vsel %vm215, 0.0, %v213
    %219 = vst [vmem:[%s123 + $0x8] sm:$0xff] %v217
    %220 = vst [vmem:[%s125 + $0x8] sm:$0xff] %v218
    %v221 = vld [vmem:[%s3] sm:$0xff]
    %v222 = vld [vmem:[%s3 + $0x8] sm:$0xff]
    %v223 = vld [vmem:[%s3 + $0x10] sm:$0xff]
    %v224 = vld [vmem:[%s3 + $0x18] sm:$0xff]
    %v225 = vld [vmem:[%s3 + $0x20] sm:$0xff]
    %v226 = vld [vmem:[%s3 + $0x28] sm:$0xff]
    %v227 = vld [vmem:[%s3 + $0x30] sm:$0xff]
    %v228 = vld [vmem:[%s3 + $0x38] sm:$0xff]
    %v229 = vld [vmem:[%s3 + $0x40] sm:$0xff]
    %v230 = vld [vmem:[%s3 + $0x48] sm:$0xff]
    %v231 = vld [vmem:[%s3 + $0x50] sm:$0xff]
    %v232 = vld [vmem:[%s3 + $0x58] sm:$0xff]
    %v233 = vld [vmem:[%s3 + $0x60] sm:$0xff]
    %v234 = vld [vmem:[%s3 + $0x68] sm:$0xff]
    %v235 = vld [vmem:[%s3 + $0x70] sm:$0xff]
    %v236 = vld [vmem:[%s3 + $0x78] sm:$0xff]
    %237 = vmatprep.subr.mxu0 0.0
    %238 = vmatpush1.msra.mxu0 %v221
    %239 = vmatprep.subr.mxu0 0.0
    %240 = vmatpush1.msra.mxu0 %v222
    %241 = vmatprep.subr.mxu0 0.0
    %242 = vmatpush1.msra.mxu0 %v223
    %243 = vmatprep.subr.mxu0 0.0
    %244 = vmatpush1.msra.mxu0 %v224
    %245 = vmatprep.subr.mxu0 0.0
    %246 = vmatpush1.msra.mxu0 %v225
    %247 = vmatprep.subr.mxu0 0.0
    %248 = vmatpush1.msra.mxu0 %v226
    %249 = vmatprep.subr.mxu0 0.0
    %250 = vmatpush1.msra.mxu0 %v227
    %251 = vmatprep.subr.mxu0 0.0
    %252 = vmatpush1.msra.mxu0 %v228
    %253 = vmatprep.subr.mxu0 0.0
    %254 = vmatpush1.msra.mxu0 %v229
    %255 = vmatprep.subr.mxu0 0.0
    %256 = vmatpush1.msra.mxu0 %v230
    %257 = vmatprep.subr.mxu0 0.0
    %258 = vmatpush1.msra.mxu0 %v231
    %259 = vmatprep.subr.mxu0 0.0
    %260 = vmatpush1.msra.mxu0 %v232
    %261 = vmatprep.subr.mxu0 0.0
    %262 = vmatpush1.msra.mxu0 %v233
    %263 = vmatprep.subr.mxu0 0.0
    %264 = vmatpush1.msra.mxu0 %v234
    %265 = vmatprep.subr.mxu0 0.0
    %266 = vmatpush1.msra.mxu0 %v235
    %267 = vmatprep.subr.mxu0 0.0
    %268 = vmatpush1.msra.mxu0 %v236
    %269 = vmatprep.subr.mxu0 0.0
    %270 = vmatpush1.msra.mxu0 0.0
    %271 = vmatprep.subr.mxu0 0.0
    %272 = vmatpush1.msra.mxu0 0.0
    %273 = vmatprep.subr.mxu0 0.0
    %274 = vmatpush1.msra.mxu0 0.0
    %275 = vmatprep.subr.mxu0 0.0
    %276 = vmatpush1.msra.mxu0 0.0
    %277 = vmatprep.subr.mxu0 0.0
    %278 = vmatpush1.msra.mxu0 0.0
    %279 = vmatprep.subr.mxu0 0.0
    %280 = vmatpush1.msra.mxu0 0.0
    %281 = vmatprep.subr.mxu0 0.0
    %282 = vmatpush1.msra.mxu0 0.0
    %283 = vmatprep.subr.mxu0 0.0
    %284 = vmatpush1.msra.mxu0 0.0
    %285 = vmatprep.subr.mxu0 0.0
    %286 = vmatpush1.msra.mxu0 0.0
    %287 = vmatprep.subr.mxu0 0.0
    %288 = vmatpush1.msra.mxu0 0.0
    %289 = vmatprep.subr.mxu0 0.0
    %290 = vmatpush1.msra.mxu0 0.0
    %291 = vmatprep.subr.mxu0 0.0
    %292 = vmatpush1.msra.mxu0 0.0
    %293 = vmatprep.subr.mxu0 0.0
    %294 = vmatpush1.msra.mxu0 0.0
    %295 = vmatprep.subr.mxu0 0.0
    %296 = vmatpush1.msra.mxu0 0.0
    %297 = vmatprep.subr.mxu0 0.0
    %298 = vmatpush1.msra.mxu0 0.0
    %299 = vmatprep.subr.mxu0 0.0
    %300 = vmatpush1.msra.mxu0 0.0
    %301 = vmatprep.mubr.f32.mxu0 0.0
    %302 = vmatmul.mubr.f32.gmra.mrb[0].mxu0 %v217
    %v303 = vpop.f32.mrb[0].mxu0
    %v304 = vadd.f32 0.0, %v303
    %v305 = vpop.f32.mrb[0].mxu0
    %306 = vdwg.mxu0
    %v307 = vadd.f32 %v304, 0.0
    %vm308 = vcmask 64512
    %v309 = vsel %vm308, %v307, 0.0
    %310 = vst [vmem:[%s125 + $0x10] sm:$0xff] %v309
    %v311 = vmul.f32 %v122, 0.9
    %v312 = vadd.f32 %v311, %v114
    %v313 = vsub.f32 %v312, 0.5
    %vm314 = vcmp.gt.f32.partialorder %v313, 0.0
    %v315 = vsel %vm314, 1, 0
    %v316 = vcvt.s32.f32 %v315
    %v317 = vsel %vm314, 0.0, %v312
    %s318 = scalar_lea.vmem [#allocation6], 32
    %319 = vst [vmem:[%s318] sm:$0xff] %v316
    %s320 = scalar_lea.vmem [#allocation5], 48
    %321 = vst [vmem:[%s320] sm:$0xff] %v317
    %v322 = vld [vmem:[%s2] sm:$0xff]
    %v323 = vld [vmem:[%s2 + $0x8] sm:$0xff]
    %v324 = vld [vmem:[%s2 + $0x10] sm:$0xff]
    %v325 = vld [vmem:[%s2 + $0x18] sm:$0xff]
    %v326 = vld [vmem:[%s2 + $0x20] sm:$0xff]
    %v327 = vld [vmem:[%s2 + $0x28] sm:$0xff]
    %v328 = vld [vmem:[%s2 + $0x30] sm:$0xff]
    %v329 = vld [vmem:[%s2 + $0x38] sm:$0xff]
    %v330 = vld [vmem:[%s2 + $0x40] sm:$0xff]
    %v331 = vld [vmem:[%s2 + $0x48] sm:$0xff]
    %v332 = vld [vmem:[%s2 + $0x50] sm:$0xff]
    %v333 = vld [vmem:[%s2 + $0x58] sm:$0xff]
    %v334 = vld [vmem:[%s2 + $0x60] sm:$0xff]
    %v335 = vld [vmem:[%s2 + $0x68] sm:$0xff]
    %v336 = vld [vmem:[%s2 + $0x70] sm:$0xff]
    %v337 = vld [vmem:[%s2 + $0x78] sm:$0xff]
    %338 = vmatprep.subr.mxu0 0.0
    %339 = vmatpush1.msra.mxu0 %v322
    %340 = vmatprep.subr.mxu0 0.0
    %341 = vmatpush1.msra.mxu0 %v323
    %342 = vmatprep.subr.mxu0 0.0
    %343 = vmatpush1.msra.mxu0 %v324
    %344 = vmatprep.subr.mxu0 0.0
    %345 = vmatpush1.msra.mxu0 %v325
    %346 = vmatprep.subr.mxu0 0.0
    %347 = vmatpush1.msra.mxu0 %v326
    %348 = vmatprep.subr.mxu0 0.0
    %349 = vmatpush1.msra.mxu0 %v327
    %350 = vmatprep.subr.mxu0 0.0
    %351 = vmatpush1.msra.mxu0 %v328
    %352 = vmatprep.subr.mxu0 0.0
    %353 = vmatpush1.msra.mxu0 %v329
    %354 = vmatprep.subr.mxu0 0.0
    %355 = vmatpush1.msra.mxu0 %v330
    %356 = vmatprep.subr.mxu0 0.0
    %357 = vmatpush1.msra.mxu0 %v331
    %358 = vmatprep.subr.mxu0 0.0
    %359 = vmatpush1.msra.mxu0 %v332
    %360 = vmatprep.subr.mxu0 0.0
    %361 = vmatpush1.msra.mxu0 %v333
    %362 = vmatprep.subr.mxu0 0.0
    %363 = vmatpush1.msra.mxu0 %v334
    %364 = vmatprep.subr.mxu0 0.0
    %365 = vmatpush1.msra.mxu0 %v335
    %366 = vmatprep.subr.mxu0 0.0
    %367 = vmatpush1.msra.mxu0 %v336
    %368 = vmatprep.subr.mxu0 0.0
    %369 = vmatpush1.msra.mxu0 %v337
    %370 = vmatprep.subr.mxu0 0.0
    %371 = vmatpush1.msra.mxu0 0.0
    %372 = vmatprep.subr.mxu0 0.0
    %373 = vmatpush1.msra.mxu0 0.0
    %374 = vmatprep.subr.mxu0 0.0
    %375 = vmatpush1.msra.mxu0 0.0
    %376 = vmatprep.subr.mxu0 0.0
    %377 = vmatpush1.msra.mxu0 0.0
    %378 = vmatprep.subr.mxu0 0.0
    %379 = vmatpush1.msra.mxu0 0.0
    %380 = vmatprep.subr.mxu0 0.0
    %381 = vmatpush1.msra.mxu0 0.0
    %382 = vmatprep.subr.mxu0 0.0
    %383 = vmatpush1.msra.mxu0 0.0
    %384 = vmatprep.subr.mxu0 0.0
    %385 = vmatpush1.msra.mxu0 0.0
    %386 = vmatprep.subr.mxu0 0.0
    %387 = vmatpush1.msra.mxu0 0.0
    %388 = vmatprep.subr.mxu0 0.0
    %389 = vmatpush1.msra.mxu0 0.0
    %390 = vmatprep.subr.mxu0 0.0
    %391 = vmatpush1.msra.mxu0 0.0
    %392 = vmatprep.subr.mxu0 0.0
    %393 = vmatpush1.msra.mxu0 0.0
    %394 = vmatprep.subr.mxu0 0.0
    %395 = vmatpush1.msra.mxu0 0.0
    %396 = vmatprep.subr.mxu0 0.0
    %397 = vmatpush1.msra.mxu0 0.0
    %398 = vmatprep.subr.mxu0 0.0
    %399 = vmatpush1.msra.mxu0 0.0
    %400 = vmatprep.subr.mxu0 0.0
    %401 = vmatpush1.msra.mxu0 0.0
    %402 = vmatprep.mubr.f32.mxu0 0.0
    %403 = vmatmul.mubr.f32.gmra.mrb[0].mxu0 %v316
    %v404 = vpop.f32.mrb[0].mxu0
    %v405 = vadd.f32 0.0, %v404
    %v406 = vpop.f32.mrb[0].mxu0
    %407 = vdwg.mxu0
    %v408 = vmul.f32 %v210, 0.8
    %v409 = vadd.f32 %v408, %v405
    %v410 = vmul.f32 %v218, 0.9
    %v411 = vadd.f32 %v410, %v409
    %v412 = vsub.f32 %v411, 0.5
    %vm413 = vcmp.gt.f32.partialorder %v412, 0.0
    %v414 = vsel %vm413, 1, 0
    %v415 = vcvt.s32.f32 %v414
    %v416 = vsel %vm413, 0.0, %v411
    %417 = vst [vmem:[%s318 + $0x8] sm:$0xff] %v415
    %418 = vst [vmem:[%s320 + $0x8] sm:$0xff] %v416
    %v419 = vld [vmem:[%s3] sm:$0xff]
    %v420 = vld [vmem:[%s3 + $0x8] sm:$0xff]
    %v421 = vld [vmem:[%s3 + $0x10] sm:$0xff]
    %v422 = vld [vmem:[%s3 + $0x18] sm:$0xff]
    %v423 = vld [vmem:[%s3 + $0x20] sm:$0xff]
    %v424 = vld [vmem:[%s3 + $0x28] sm:$0xff]
    %v425 = vld [vmem:[%s3 + $0x30] sm:$0xff]
    %v426 = vld [vmem:[%s3 + $0x38] sm:$0xff]
    %v427 = vld [vmem:[%s3 + $0x40] sm:$0xff]
    %v428 = vld [vmem:[%s3 + $0x48] sm:$0xff]
    %v429 = vld [vmem:[%s3 + $0x50] sm:$0xff]
    %v430 = vld [vmem:[%s3 + $0x58] sm:$0xff]
    %v431 = vld [vmem:[%s3 + $0x60] sm:$0xff]
    %v432 = vld [vmem:[%s3 + $0x68] sm:$0xff]
    %v433 = vld [vmem:[%s3 + $0x70] sm:$0xff]
    %v434 = vld [vmem:[%s3 + $0x78] sm:$0xff]
    %435 = vmatprep.subr.mxu0 0.0
    %436 = vmatpush1.msra.mxu0 %v419
    %437 = vmatprep.subr.mxu0 0.0
    %438 = vmatpush1.msra.mxu0 %v420
    %439 = vmatprep.subr.mxu0 0.0
    %440 = vmatpush1.msra.mxu0 %v421
    %441 = vmatprep.subr.mxu0 0.0
    %442 = vmatpush1.msra.mxu0 %v422
    %443 = vmatprep.subr.mxu0 0.0
    %444 = vmatpush1.msra.mxu0 %v423
    %445 = vmatprep.subr.mxu0 0.0
    %446 = vmatpush1.msra.mxu0 %v424
    %447 = vmatprep.subr.mxu0 0.0
    %448 = vmatpush1.msra.mxu0 %v425
    %449 = vmatprep.subr.mxu0 0.0
    %450 = vmatpush1.msra.mxu0 %v426
    %451 = vmatprep.subr.mxu0 0.0
    %452 = vmatpush1.msra.mxu0 %v427
    %453 = vmatprep.subr.mxu0 0.0
    %454 = vmatpush1.msra.mxu0 %v428
    %455 = vmatprep.subr.mxu0 0.0
    %456 = vmatpush1.msra.mxu0 %v429
    %457 = vmatprep.subr.mxu0 0.0
    %458 = vmatpush1.msra.mxu0 %v430
    %459 = vmatprep.subr.mxu0 0.0
    %460 = vmatpush1.msra.mxu0 %v431
    %461 = vmatprep.subr.mxu0 0.0
    %462 = vmatpush1.msra.mxu0 %v432
    %463 = vmatprep.subr.mxu0 0.0
    %464 = vmatpush1.msra.mxu0 %v433
    %465 = vmatprep.subr.mxu0 0.0
    %466 = vmatpush1.msra.mxu0 %v434
    %467 = vmatprep.subr.mxu0 0.0
    %468 = vmatpush1.msra.mxu0 0.0
    %469 = vmatprep.subr.mxu0 0.0
    %470 = vmatpush1.msra.mxu0 0.0
    %471 = vmatprep.subr.mxu0 0.0
    %472 = vmatpush1.msra.mxu0 0.0
    %473 = vmatprep.subr.mxu0 0.0
    %474 = vmatpush1.msra.mxu0 0.0
    %475 = vmatprep.subr.mxu0 0.0
    %476 = vmatpush1.msra.mxu0 0.0
    %477 = vmatprep.subr.mxu0 0.0
    %478 = vmatpush1.msra.mxu0 0.0
    %479 = vmatprep.subr.mxu0 0.0
    %480 = vmatpush1.msra.mxu0 0.0
    %481 = vmatprep.subr.mxu0 0.0
    %482 = vmatpush1.msra.mxu0 0.0
    %483 = vmatprep.subr.mxu0 0.0
    %484 = vmatpush1.msra.mxu0 0.0
    %485 = vmatprep.subr.mxu0 0.0
    %486 = vmatpush1.msra.mxu0 0.0
    %487 = vmatprep.subr.mxu0 0.0
    %488 = vmatpush1.msra.mxu0 0.0
    %489 = vmatprep.subr.mxu0 0.0
    %490 = vmatpush1.msra.mxu0 0.0
    %491 = vmatprep.subr.mxu0 0.0
    %492 = vmatpush1.msra.mxu0 0.0
    %493 = vmatprep.subr.mxu0 0.0
    %494 = vmatpush1.msra.mxu0 0.0
    %495 = vmatprep.subr.mxu0 0.0
    %496 = vmatpush1.msra.mxu0 0.0
    %497 = vmatprep.subr.mxu0 0.0
    %498 = vmatpush1.msra.mxu0 0.0
    %499 = vmatprep.mubr.f32.mxu0 0.0
    %500 = vmatmul.mubr.f32.gmra.mrb[0].mxu0 %v415
    %v501 = vpop.f32.mrb[0].mxu0
    %v502 = vadd.f32 0.0, %v501
    %v503 = vpop.f32.mrb[0].mxu0
    %504 = vdwg.mxu0
    %v505 = vmul.f32 %v304, 0.8
    %v506 = vadd.f32 %v505, %v502
    %v507 = vmul.f32 %v307, 0.9
    %v508 = vadd.f32 %v507, %v506
    %v509 = vsel %vm308, %v508, 0.0
    %510 = vst [vmem:[%s320 + $0x10] sm:$0xff] %v509
    %v511 = vmul.f32 %v317, 0.9
    %v512 = vadd.f32 %v511, %v114
    %v513 = vsub.f32 %v512, 0.5
    %vm514 = vcmp.gt.f32.partialorder %v513, 0.0
    %v515 = vsel %vm514, 1, 0
    %v516 = vcvt.s32.f32 %v515
    %v517 = vsel %vm514, 0.0, %v512
    %s518 = scalar_lea.vmem [#allocation6], 48
    %519 = vst [vmem:[%s518] sm:$0xff] %v516
    %s520 = scalar_lea.vmem [#allocation5], 72
    %521 = vst [vmem:[%s520] sm:$0xff] %v517
    %v522 = vld [vmem:[%s2] sm:$0xff]
    %v523 = vld [vmem:[%s2 + $0x8] sm:$0xff]
    %v524 = vld [vmem:[%s2 + $0x10] sm:$0xff]
    %v525 = vld [vmem:[%s2 + $0x18] sm:$0xff]
    %v526 = vld [vmem:[%s2 + $0x20] sm:$0xff]
    %v527 = vld [vmem:[%s2 + $0x28] sm:$0xff]
    %v528 = vld [vmem:[%s2 + $0x30] sm:$0xff]
    %v529 = vld [vmem:[%s2 + $0x38] sm:$0xff]
    %v530 = vld [vmem:[%s2 + $0x40] sm:$0xff]
    %v531 = vld [vmem:[%s2 + $0x48] sm:$0xff]
    %v532 = vld [vmem:[%s2 + $0x50] sm:$0xff]
    %v533 = vld [vmem:[%s2 + $0x58] sm:$0xff]
    %v534 = vld [vmem:[%s2 + $0x60] sm:$0xff]
    %v535 = vld [vmem:[%s2 + $0x68] sm:$0xff]
    %v536 = vld [vmem:[%s2 + $0x70] sm:$0xff]
    %v537 = vld [vmem:[%s2 + $0x78] sm:$0xff]
    %538 = vmatprep.subr.mxu0 0.0
    %539 = vmatpush1.msra.mxu0 %v522
    %540 = vmatprep.subr.mxu0 0.0
    %541 = vmatpush1.msra.mxu0 %v523
    %542 = vmatprep.subr.mxu0 0.0
    %543 = vmatpush1.msra.mxu0 %v524
    %544 = vmatprep.subr.mxu0 0.0
    %545 = vmatpush1.msra.mxu0 %v525
    %546 = vmatprep.subr.mxu0 0.0
    %547 = vmatpush1.msra.mxu0 %v526
    %548 = vmatprep.subr.mxu0 0.0
    %549 = vmatpush1.msra.mxu0 %v527
    %550 = vmatprep.subr.mxu0 0.0
    %551 = vmatpush1.msra.mxu0 %v528
    %552 = vmatprep.subr.mxu0 0.0
    %553 = vmatpush1.msra.mxu0 %v529
    %554 = vmatprep.subr.mxu0 0.0
    %555 = vmatpush1.msra.mxu0 %v530
    %556 = vmatprep.subr.mxu0 0.0
    %557 = vmatpush1.msra.mxu0 %v531
    %558 = vmatprep.subr.mxu0 0.0
    %559 = vmatpush1.msra.mxu0 %v532
    %560 = vmatprep.subr.mxu0 0.0
    %561 = vmatpush1.msra.mxu0 %v533
    %562 = vmatprep.subr.mxu0 0.0
    %563 = vmatpush1.msra.mxu0 %v534
    %564 = vmatprep.subr.mxu0 0.0
    %565 = vmatpush1.msra.mxu0 %v535
    %566 = vmatprep.subr.mxu0 0.0
    %567 = vmatpush1.msra.mxu0 %v536
    %568 = vmatprep.subr.mxu0 0.0
    %569 = vmatpush1.msra.mxu0 %v537
    %570 = vmatprep.subr.mxu0 0.0
    %571 = vmatpush1.msra.mxu0 0.0
    %572 = vmatprep.subr.mxu0 0.0
    %573 = vmatpush1.msra.mxu0 0.0
    %574 = vmatprep.subr.mxu0 0.0
    %575 = vmatpush1.msra.mxu0 0.0
    %576 = vmatprep.subr.mxu0 0.0
    %577 = vmatpush1.msra.mxu0 0.0
    %578 = vmatprep.subr.mxu0 0.0
    %579 = vmatpush1.msra.mxu0 0.0
    %580 = vmatprep.subr.mxu0 0.0
    %581 = vmatpush1.msra.mxu0 0.0
    %582 = vmatprep.subr.mxu0 0.0
    %583 = vmatpush1.msra.mxu0 0.0
    %584 = vmatprep.subr.mxu0 0.0
    %585 = vmatpush1.msra.mxu0 0.0
    %586 = vmatprep.subr.mxu0 0.0
    %587 = vmatpush1.msra.mxu0 0.0
    %588 = vmatprep.subr.mxu0 0.0
    %589 = vmatpush1.msra.mxu0 0.0
    %590 = vmatprep.subr.mxu0 0.0
    %591 = vmatpush1.msra.mxu0 0.0
    %592 = vmatprep.subr.mxu0 0.0
    %593 = vmatpush1.msra.mxu0 0.0
    %594 = vmatprep.subr.mxu0 0.0
    %595 = vmatpush1.msra.mxu0 0.0
    %596 = vmatprep.subr.mxu0 0.0
    %597 = vmatpush1.msra.mxu0 0.0
    %598 = vmatprep.subr.mxu0 0.0
    %599 = vmatpush1.msra.mxu0 0.0
    %600 = vmatprep.subr.mxu0 0.0
    %601 = vmatpush1.msra.mxu0 0.0
    %602 = vmatprep.mubr.f32.mxu0 0.0
    %603 = vmatmul.mubr.f32.gmra.mrb[0].mxu0 %v516
    %v604 = vpop.f32.mrb[0].mxu0
    %v605 = vadd.f32 0.0, %v604
    %v606 = vpop.f32.mrb[0].mxu0
    %607 = vdwg.mxu0
    %v608 = vmul.f32 %v409, 0.8
    %v609 = vadd.f32 %v608, %v605
    %v610 = vmul.f32 %v416, 0.9
    %v611 = vadd.f32 %v610, %v609
    %v612 = vsub.f32 %v611, 0.5
    %vm613 = vcmp.gt.f32.partialorder %v612, 0.0
    %v614 = vsel %vm613, 1, 0
    %v615 = vcvt.s32.f32 %v614
    %v616 = vsel %vm613, 0.0, %v611
    %617 = vst [vmem:[%s518 + $0x8] sm:$0xff] %v615
    %618 = vst [vmem:[%s520 + $0x8] sm:$0xff] %v616
    %v619 = vld [vmem:[%s3] sm:$0xff]
    %v620 = vld [vmem:[%s3 + $0x8] sm:$0xff]
    %v621 = vld [vmem:[%s3 + $0x10] sm:$0xff]
    %v622 = vld [vmem:[%s3 + $0x18] sm:$0xff]
    %v623 = vld [vmem:[%s3 + $0x20] sm:$0xff]
    %v624 = vld [vmem:[%s3 + $0x28] sm:$0xff]
    %v625 = vld [vmem:[%s3 + $0x30] sm:$0xff]
    %v626 = vld [vmem:[%s3 + $0x38] sm:$0xff]
    %v627 = vld [vmem:[%s3 + $0x40] sm:$0xff]
    %v628 = vld [vmem:[%s3 + $0x48] sm:$0xff]
    %v629 = vld [vmem:[%s3 + $0x50] sm:$0xff]
    %v630 = vld [vmem:[%s3 + $0x58] sm:$0xff]
    %v631 = vld [vmem:[%s3 + $0x60] sm:$0xff]
    %v632 = vld [vmem:[%s3 + $0x68] sm:$0xff]
    %v633 = vld [vmem:[%s3 + $0x70] sm:$0xff]
    %v634 = vld [vmem:[%s3 + $0x78] sm:$0xff]
    %635 = vmatprep.subr.mxu0 0.0
    %636 = vmatpush1.msra.mxu0 %v619
    %637 = vmatprep.subr.mxu0 0.0
    %638 = vmatpush1.msra.mxu0 %v620
    %639 = vmatprep.subr.mxu0 0.0
    %640 = vmatpush1.msra.mxu0 %v621
    %641 = vmatprep.subr.mxu0 0.0
    %642 = vmatpush1.msra.mxu0 %v622
    %643 = vmatprep.subr.mxu0 0.0
    %644 = vmatpush1.msra.mxu0 %v623
    %645 = vmatprep.subr.mxu0 0.0
    %646 = vmatpush1.msra.mxu0 %v624
    %647 = vmatprep.subr.mxu0 0.0
    %648 = vmatpush1.msra.mxu0 %v625
    %649 = vmatprep.subr.mxu0 0.0
    %650 = vmatpush1.msra.mxu0 %v626
    %651 = vmatprep.subr.mxu0 0.0
    %652 = vmatpush1.msra.mxu0 %v627
    %653 = vmatprep.subr.mxu0 0.0
    %654 = vmatpush1.msra.mxu0 %v628
    %655 = vmatprep.subr.mxu0 0.0
    %656 = vmatpush1.msra.mxu0 %v629
    %657 = vmatprep.subr.mxu0 0.0
    %658 = vmatpush1.msra.mxu0 %v630
    %659 = vmatprep.subr.mxu0 0.0
    %660 = vmatpush1.msra.mxu0 %v631
    %661 = vmatprep.subr.mxu0 0.0
    %662 = vmatpush1.msra.mxu0 %v632
    %663 = vmatprep.subr.mxu0 0.0
    %664 = vmatpush1.msra.mxu0 %v633
    %665 = vmatprep.subr.mxu0 0.0
    %666 = vmatpush1.msra.mxu0 %v634
    %667 = vmatprep.subr.mxu0 0.0
    %668 = vmatpush1.msra.mxu0 0.0
    %669 = vmatprep.subr.mxu0 0.0
    %670 = vmatpush1.msra.mxu0 0.0
    %671 = vmatprep.subr.mxu0 0.0
    %672 = vmatpush1.msra.mxu0 0.0
    %673 = vmatprep.subr.mxu0 0.0
    %674 = vmatpush1.msra.mxu0 0.0
    %675 = vmatprep.subr.mxu0 0.0
    %676 = vmatpush1.msra.mxu0 0.0
    %677 = vmatprep.subr.mxu0 0.0
    %678 = vmatpush1.msra.mxu0 0.0
    %679 = vmatprep.subr.mxu0 0.0
    %680 = vmatpush1.msra.mxu0 0.0
    %681 = vmatprep.subr.mxu0 0.0
    %682 = vmatpush1.msra.mxu0 0.0
    %683 = vmatprep.subr.mxu0 0.0
    %684 = vmatpush1.msra.mxu0 0.0
    %685 = vmatprep.subr.mxu0 0.0
    %686 = vmatpush1.msra.mxu0 0.0
    %687 = vmatprep.subr.mxu0 0.0
    %688 = vmatpush1.msra.mxu0 0.0
    %689 = vmatprep.subr.mxu0 0.0
    %690 = vmatpush1.msra.mxu0 0.0
    %691 = vmatprep.subr.mxu0 0.0
    %692 = vmatpush1.msra.mxu0 0.0
    %693 = vmatprep.subr.mxu0 0.0
    %694 = vmatpush1.msra.mxu0 0.0
    %695 = vmatprep.subr.mxu0 0.0
    %696 = vmatpush1.msra.mxu0 0.0
    %697 = vmatprep.subr.mxu0 0.0
    %698 = vmatpush1.msra.mxu0 0.0
    %699 = vmatprep.mubr.f32.mxu0 0.0
    %700 = vmatmul.mubr.f32.gmra.mrb[0].mxu0 %v615
    %v701 = vpop.f32.mrb[0].mxu0
    %v702 = vadd.f32 0.0, %v701
    %v703 = vpop.f32.mrb[0].mxu0
    %704 = vdwg.mxu0
    %v705 = vmul.f32 %v506, 0.8
    %v706 = vadd.f32 %v705, %v702
    %v707 = vmul.f32 %v508, 0.9
    %v708 = vadd.f32 %v707, %v706
    %v709 = vsel %vm308, %v708, 0.0
    %710 = vst [vmem:[%s520 + $0x10] sm:$0xff] %v709
    %v711 = vmul.f32 %v517, 0.9
    %v712 = vadd.f32 %v711, %v114
    %v713 = vsub.f32 %v712, 0.5
    %vm714 = vcmp.gt.f32.partialorder %v713, 0.0
    %v715 = vsel %vm714, 1, 0
    %v716 = vcvt.s32.f32 %v715
    %v717 = vsel %vm714, 0.0, %v712
    %s718 = scalar_lea.vmem [#allocation6], 64
    %719 = vst [vmem:[%s718] sm:$0xff] %v716
    %s720 = scalar_lea.vmem [#allocation5], 96
    %721 = vst [vmem:[%s720] sm:$0xff] %v717
    %v722 = vld [vmem:[%s2] sm:$0xff]
    %v723 = vld [vmem:[%s2 + $0x8] sm:$0xff]
    %v724 = vld [vmem:[%s2 + $0x10] sm:$0xff]
    %v725 = vld [vmem:[%s2 + $0x18] sm:$0xff]
    %v726 = vld [vmem:[%s2 + $0x20] sm:$0xff]
    %v727 = vld [vmem:[%s2 + $0x28] sm:$0xff]
    %v728 = vld [vmem:[%s2 + $0x30] sm:$0xff]
    %v729 = vld [vmem:[%s2 + $0x38] sm:$0xff]
    %v730 = vld [vmem:[%s2 + $0x40] sm:$0xff]
    %v731 = vld [vmem:[%s2 + $0x48] sm:$0xff]
    %v732 = vld [vmem:[%s2 + $0x50] sm:$0xff]
    %v733 = vld [vmem:[%s2 + $0x58] sm:$0xff]
    %v734 = vld [vmem:[%s2 + $0x60] sm:$0xff]
    %v735 = vld [vmem:[%s2 + $0x68] sm:$0xff]
    %v736 = vld [vmem:[%s2 + $0x70] sm:$0xff]
    %v737 = vld [vmem:[%s2 + $0x78] sm:$0xff]
    %738 = vmatprep.subr.mxu0 0.0
    %739 = vmatpush1.msra.mxu0 %v722
    %740 = vmatprep.subr.mxu0 0.0
    %741 = vmatpush1.msra.mxu0 %v723
    %742 = vmatprep.subr.mxu0 0.0
    %743 = vmatpush1.msra.mxu0 %v724
    %744 = vmatprep.subr.mxu0 0.0
    %745 = vmatpush1.msra.mxu0 %v725
    %746 = vmatprep.subr.mxu0 0.0
    %747 = vmatpush1.msra.mxu0 %v726
    %748 = vmatprep.subr.mxu0 0.0
    %749 = vmatpush1.msra.mxu0 %v727
    %750 = vmatprep.subr.mxu0 0.0
    %751 = vmatpush1.msra.mxu0 %v728
    %752 = vmatprep.subr.mxu0 0.0
    %753 = vmatpush1.msra.mxu0 %v729
    %754 = vmatprep.subr.mxu0 0.0
    %755 = vmatpush1.msra.mxu0 %v730
    %756 = vmatprep.subr.mxu0 0.0
    %757 = vmatpush1.msra.mxu0 %v731
    %758 = vmatprep.subr.mxu0 0.0
    %759 = vmatpush1.msra.mxu0 %v732
    %760 = vmatprep.subr.mxu0 0.0
    %761 = vmatpush1.msra.mxu0 %v733
    %762 = vmatprep.subr.mxu0 0.0
    %763 = vmatpush1.msra.mxu0 %v734
    %764 = vmatprep.subr.mxu0 0.0
    %765 = vmatpush1.msra.mxu0 %v735
    %766 = vmatprep.subr.mxu0 0.0
    %767 = vmatpush1.msra.mxu0 %v736
    %768 = vmatprep.subr.mxu0 0.0
    %769 = vmatpush1.msra.mxu0 %v737
    %770 = vmatprep.subr.mxu0 0.0
    %771 = vmatpush1.msra.mxu0 0.0
    %772 = vmatprep.subr.mxu0 0.0
    %773 = vmatpush1.msra.mxu0 0.0
    %774 = vmatprep.subr.mxu0 0.0
    %775 = vmatpush1.msra.mxu0 0.0
    %776 = vmatprep.subr.mxu0 0.0
    %777 = vmatpush1.msra.mxu0 0.0
    %778 = vmatprep.subr.mxu0 0.0
    %779 = vmatpush1.msra.mxu0 0.0
    %780 = vmatprep.subr.mxu0 0.0
    %781 = vmatpush1.msra.mxu0 0.0
    %782 = vmatprep.subr.mxu0 0.0
    %783 = vmatpush1.msra.mxu0 0.0
    %784 = vmatprep.subr.mxu0 0.0
    %785 = vmatpush1.msra.mxu0 0.0
    %786 = vmatprep.subr.mxu0 0.0
    %787 = vmatpush1.msra.mxu0 0.0
    %788 = vmatprep.subr.mxu0 0.0
    %789 = vmatpush1.msra.mxu0 0.0
    %790 = vmatprep.subr.mxu0 0.0
    %791 = vmatpush1.msra.mxu0 0.0
    %792 = vmatprep.subr.mxu0 0.0
    %793 = vmatpush1.msra.mxu0 0.0
    %794 = vmatprep.subr.mxu0 0.0
    %795 = vmatpush1.msra.mxu0 0.0
    %796 = vmatprep.subr.mxu0 0.0
    %797 = vmatpush1.msra.mxu0 0.0
    %798 = vmatprep.subr.mxu0 0.0
    %799 = vmatpush1.msra.mxu0 0.0
    %800 = vmatprep.subr.mxu0 0.0
    %801 = vmatpush1.msra.mxu0 0.0
    %802 = vmatprep.mubr.f32.mxu0 0.0
    %803 = vmatmul.mubr.f32.gmra.mrb[0].mxu0 %v716
    %v804 = vpop.f32.mrb[0].mxu0
    %v805 = vadd.f32 0.0, %v804
    %v806 = vpop.f32.mrb[0].mxu0
    %807 = vdwg.mxu0
    %v808 = vmul.f32 %v609, 0.8
    %v809 = vadd.f32 %v808, %v805
    %v810 = vmul.f32 %v616, 0.9
    %v811 = vadd.f32 %v810, %v809
    %v812 = vsub.f32 %v811, 0.5
    %vm813 = vcmp.gt.f32.partialorder %v812, 0.0
    %v814 = vsel %vm813, 1, 0
    %v815 = vcvt.s32.f32 %v814
    %v816 = vsel %vm813, 0.0, %v811
    %817 = vst [vmem:[%s718 + $0x8] sm:$0xff] %v815
    %818 = vst [vmem:[%s720 + $0x8] sm:$0xff] %v816
    %v819 = vld [vmem:[%s3] sm:$0xff]
    %v820 = vld [vmem:[%s3 + $0x8] sm:$0xff]
    %v821 = vld [vmem:[%s3 + $0x10] sm:$0xff]
    %v822 = vld [vmem:[%s3 + $0x18] sm:$0xff]
    %v823 = vld [vmem:[%s3 + $0x20] sm:$0xff]
    %v824 = vld [vmem:[%s3 + $0x28] sm:$0xff]
    %v825 = vld [vmem:[%s3 + $0x30] sm:$0xff]
    %v826 = vld [vmem:[%s3 + $0x38] sm:$0xff]
    %v827 = vld [vmem:[%s3 + $0x40] sm:$0xff]
    %v828 = vld [vmem:[%s3 + $0x48] sm:$0xff]
    %v829 = vld [vmem:[%s3 + $0x50] sm:$0xff]
    %v830 = vld [vmem:[%s3 + $0x58] sm:$0xff]
    %v831 = vld [vmem:[%s3 + $0x60] sm:$0xff]
    %v832 = vld [vmem:[%s3 + $0x68] sm:$0xff]
    %v833 = vld [vmem:[%s3 + $0x70] sm:$0xff]
    %v834 = vld [vmem:[%s3 + $0x78] sm:$0xff]
    %835 = vmatprep.subr.mxu0 0.0
    %836 = vmatpush1.msra.mxu0 %v819
    %837 = vmatprep.subr.mxu0 0.0
    %838 = vmatpush1.msra.mxu0 %v820
    %839 = vmatprep.subr.mxu0 0.0
    %840 = vmatpush1.msra.mxu0 %v821
    %841 = vmatprep.subr.mxu0 0.0
    %842 = vmatpush1.msra.mxu0 %v822
    %843 = vmatprep.subr.mxu0 0.0
    %844 = vmatpush1.msra.mxu0 %v823
    %845 = vmatprep.subr.mxu0 0.0
    %846 = vmatpush1.msra.mxu0 %v824
    %847 = vmatprep.subr.mxu0 0.0
    %848 = vmatpush1.msra.mxu0 %v825
    %849 = vmatprep.subr.mxu0 0.0
    %850 = vmatpush1.msra.mxu0 %v826
    %851 = vmatprep.subr.mxu0 0.0
    %852 = vmatpush1.msra.mxu0 %v827
    %853 = vmatprep.subr.mxu0 0.0
    %854 = vmatpush1.msra.mxu0 %v828
    %855 = vmatprep.subr.mxu0 0.0
    %856 = vmatpush1.msra.mxu0 %v829
    %857 = vmatprep.subr.mxu0 0.0
    %858 = vmatpush1.msra.mxu0 %v830
    %859 = vmatprep.subr.mxu0 0.0
    %860 = vmatpush1.msra.mxu0 %v831
    %861 = vmatprep.subr.mxu0 0.0
    %862 = vmatpush1.msra.mxu0 %v832
    %863 = vmatprep.subr.mxu0 0.0
    %864 = vmatpush1.msra.mxu0 %v833
    %865 = vmatprep.subr.mxu0 0.0
    %866 = vmatpush1.msra.mxu0 %v834
    %867 = vmatprep.subr.mxu0 0.0
    %868 = vmatpush1.msra.mxu0 0.0
    %869 = vmatprep.subr.mxu0 0.0
    %870 = vmatpush1.msra.mxu0 0.0
    %871 = vmatprep.subr.mxu0 0.0
    %872 = vmatpush1.msra.mxu0 0.0
    %873 = vmatprep.subr.mxu0 0.0
    %874 = vmatpush1.msra.mxu0 0.0
    %875 = vmatprep.subr.mxu0 0.0
    %876 = vmatpush1.msra.mxu0 0.0
    %877 = vmatprep.subr.mxu0 0.0
    %878 = vmatpush1.msra.mxu0 0.0
    %879 = vmatprep.subr.mxu0 0.0
    %880 = vmatpush1.msra.mxu0 0.0
    %881 = vmatprep.subr.mxu0 0.0
    %882 = vmatpush1.msra.mxu0 0.0
    %883 = vmatprep.subr.mxu0 0.0
    %884 = vmatpush1.msra.mxu0 0.0
    %885 = vmatprep.subr.mxu0 0.0
    %886 = vmatpush1.msra.mxu0 0.0
    %887 = vmatprep.subr.mxu0 0.0
    %888 = vmatpush1.msra.mxu0 0.0
    %889 = vmatprep.subr.mxu0 0.0
    %890 = vmatpush1.msra.mxu0 0.0
    %891 = vmatprep.subr.mxu0 0.0
    %892 = vmatpush1.msra.mxu0 0.0
    %893 = vmatprep.subr.mxu0 0.0
    %894 = vmatpush1.msra.mxu0 0.0
    %895 = vmatprep.subr.mxu0 0.0
    %896 = vmatpush1.msra.mxu0 0.0
    %897 = vmatprep.subr.mxu0 0.0
    %898 = vmatpush1.msra.mxu0 0.0
    %899 = vmatprep.mubr.f32.mxu0 0.0
    %900 = vmatmul.mubr.f32.gmra.mrb[0].mxu0 %v815
    %v901 = vpop.f32.mrb[0].mxu0
    %v902 = vadd.f32 0.0, %v901
    %v903 = vpop.f32.mrb[0].mxu0
    %904 = vdwg.mxu0
    %v905 = vmul.f32 %v706, 0.8
    %v906 = vadd.f32 %v905, %v902
    %v907 = vmul.f32 %v708, 0.9
    %v908 = vadd.f32 %v907, %v906
    %v909 = vsel %vm308, %v908, 0.0
    %910 = vst [vmem:[%s720 + $0x10] sm:$0xff] %v909
    %v911 = vmul.f32 %v717, 0.9
    %v912 = vadd.f32 %v911, %v114
    %v913 = vsub.f32 %v912, 0.5
    %vm914 = vcmp.gt.f32.partialorder %v913, 0.0
    %v915 = vsel %vm914, 1, 0
    %v916 = vcvt.s32.f32 %v915
    %v917 = vsel %vm914, 0.0, %v912
    %s918 = scalar_lea.vmem [#allocation6], 80
    %919 = vst [vmem:[%s918] sm:$0xff] %v916
    %s920 = scalar_lea.vmem [#allocation5], 120
    %921 = vst [vmem:[%s920] sm:$0xff] %v917
    %v922 = vld [vmem:[%s2] sm:$0xff]
    %v923 = vld [vmem:[%s2 + $0x8] sm:$0xff]
    %v924 = vld [vmem:[%s2 + $0x10] sm:$0xff]
    %v925 = vld [vmem:[%s2 + $0x18] sm:$0xff]
    %v926 = vld [vmem:[%s2 + $0x20] sm:$0xff]
    %v927 = vld [vmem:[%s2 + $0x28] sm:$0xff]
    %v928 = vld [vmem:[%s2 + $0x30] sm:$0xff]
    %v929 = vld [vmem:[%s2 + $0x38] sm:$0xff]
    %v930 = vld [vmem:[%s2 + $0x40] sm:$0xff]
    %v931 = vld [vmem:[%s2 + $0x48] sm:$0xff]
    %v932 = vld [vmem:[%s2 + $0x50] sm:$0xff]
    %v933 = vld [vmem:[%s2 + $0x58] sm:$0xff]
    %v934 = vld [vmem:[%s2 + $0x60] sm:$0xff]
    %v935 = vld [vmem:[%s2 + $0x68] sm:$0xff]
    %v936 = vld [vmem:[%s2 + $0x70] sm:$0xff]
    %v937 = vld [vmem:[%s2 + $0x78] sm:$0xff]
    %938 = vmatprep.subr.mxu0 0.0
    %939 = vmatpush1.msra.mxu0 %v922
    %940 = vmatprep.subr.mxu0 0.0
    %941 = vmatpush1.msra.mxu0 %v923
    %942 = vmatprep.subr.mxu0 0.0
    %943 = vmatpush1.msra.mxu0 %v924
    %944 = vmatprep.subr.mxu0 0.0
    %945 = vmatpush1.msra.mxu0 %v925
    %946 = vmatprep.subr.mxu0 0.0
    %947 = vmatpush1.msra.mxu0 %v926
    %948 = vmatprep.subr.mxu0 0.0
    %949 = vmatpush1.msra.mxu0 %v927
    %950 = vmatprep.subr.mxu0 0.0
    %951 = vmatpush1.msra.mxu0 %v928
    %952 = vmatprep.subr.mxu0 0.0
    %953 = vmatpush1.msra.mxu0 %v929
    %954 = vmatprep.subr.mxu0 0.0
    %955 = vmatpush1.msra.mxu0 %v930
    %956 = vmatprep.subr.mxu0 0.0
    %957 = vmatpush1.msra.mxu0 %v931
    %958 = vmatprep.subr.mxu0 0.0
    %959 = vmatpush1.msra.mxu0 %v932
    %960 = vmatprep.subr.mxu0 0.0
    %961 = vmatpush1.msra.mxu0 %v933
    %962 = vmatprep.subr.mxu0 0.0
    %963 = vmatpush1.msra.mxu0 %v934
    %964 = vmatprep.subr.mxu0 0.0
    %965 = vmatpush1.msra.mxu0 %v935
    %966 = vmatprep.subr.mxu0 0.0
    %967 = vmatpush1.msra.mxu0 %v936
    %968 = vmatprep.subr.mxu0 0.0
    %969 = vmatpush1.msra.mxu0 %v937
    %970 = vmatprep.subr.mxu0 0.0
    %971 = vmatpush1.msra.mxu0 0.0
    %972 = vmatprep.subr.mxu0 0.0
    %973 = vmatpush1.msra.mxu0 0.0
    %974 = vmatprep.subr.mxu0 0.0
    %975 = vmatpush1.msra.mxu0 0.0
    %976 = vmatprep.subr.mxu0 0.0
    %977 = vmatpush1.msra.mxu0 0.0
    %978 = vmatprep.subr.mxu0 0.0
    %979 = vmatpush1.msra.mxu0 0.0
    %980 = vmatprep.subr.mxu0 0.0
    %981 = vmatpush1.msra.mxu0 0.0
    %982 = vmatprep.subr.mxu0 0.0
    %983 = vmatpush1.msra.mxu0 0.0
    %984 = vmatprep.subr.mxu0 0.0
    %985 = vmatpush1.msra.mxu0 0.0
    %986 = vmatprep.subr.mxu0 0.0
    %987 = vmatpush1.msra.mxu0 0.0
    %988 = vmatprep.subr.mxu0 0.0
    %989 = vmatpush1.msra.mxu0 0.0
    %990 = vmatprep.subr.mxu0 0.0
    %991 = vmatpush1.msra.mxu0 0.0
    %992 = vmatprep.subr.mxu0 0.0
    %993 = vmatpush1.msra.mxu0 0.0
    %994 = vmatprep.subr.mxu0 0.0
    %995 = vmatpush1.msra.mxu0 0.0
    %996 = vmatprep.subr.mxu0 0.0
    %997 = vmatpush1.msra.mxu0 0.0
    %998 = vmatprep.subr.mxu0 0.0
    %999 = vmatpush1.msra.mxu0 0.0
    %1000 = vmatprep.subr.mxu0 0.0
    %1001 = vmatpush1.msra.mxu0 0.0
    %1002 = vmatprep.mubr.f32.mxu0 0.0
    %1003 = vmatmul.mubr.f32.gmra.mrb[0].mxu0 %v916
    %v1004 = vpop.f32.mrb[0].mxu0
    %v1005 = vadd.f32 0.0, %v1004
    %v1006 = vpop.f32.mrb[0].mxu0
    %1007 = vdwg.mxu0
    %v1008 = vmul.f32 %v809, 0.8
    %v1009 = vadd.f32 %v1008, %v1005
    %v1010 = vmul.f32 %v816, 0.9
    %v1011 = vadd.f32 %v1010, %v1009
    %v1012 = vsub.f32 %v1011, 0.5
    %vm1013 = vcmp.gt.f32.partialorder %v1012, 0.0
    %v1014 = vsel %vm1013, 1, 0
    %v1015 = vcvt.s32.f32 %v1014
    %v1016 = vsel %vm1013, 0.0, %v1011
    %1017 = vst [vmem:[%s918 + $0x8] sm:$0xff] %v1015
    %1018 = vst [vmem:[%s920 + $0x8] sm:$0xff] %v1016
    %v1019 = vld [vmem:[%s3] sm:$0xff]
    %v1020 = vld [vmem:[%s3 + $0x8] sm:$0xff]
    %v1021 = vld [vmem:[%s3 + $0x10] sm:$0xff]
    %v1022 = vld [vmem:[%s3 + $0x18] sm:$0xff]
    %v1023 = vld [vmem:[%s3 + $0x20] sm:$0xff]
    %v1024 = vld [vmem:[%s3 + $0x28] sm:$0xff]
    %v1025 = vld [vmem:[%s3 + $0x30] sm:$0xff]
    %v1026 = vld [vmem:[%s3 + $0x38] sm:$0xff]
    %v1027 = vld [vmem:[%s3 + $0x40] sm:$0xff]
    %v1028 = vld [vmem:[%s3 + $0x48] sm:$0xff]
    %v1029 = vld [vmem:[%s3 + $0x50] sm:$0xff]
    %v1030 = vld [vmem:[%s3 + $0x58] sm:$0xff]
    %v1031 = vld [vmem:[%s3 + $0x60] sm:$0xff]
    %v1032 = vld [vmem:[%s3 + $0x68] sm:$0xff]
    %v1033 = vld [vmem:[%s3 + $0x70] sm:$0xff]
    %v1034 = vld [vmem:[%s3 + $0x78] sm:$0xff]
    %1035 = vmatprep.subr.mxu0 0.0
    %1036 = vmatpush1.msra.mxu0 %v1019
    %1037 = vmatprep.subr.mxu0 0.0
    %1038 = vmatpush1.msra.mxu0 %v1020
    %1039 = vmatprep.subr.mxu0 0.0
    %1040 = vmatpush1.msra.mxu0 %v1021
    %1041 = vmatprep.subr.mxu0 0.0
    %1042 = vmatpush1.msra.mxu0 %v1022
    %1043 = vmatprep.subr.mxu0 0.0
    %1044 = vmatpush1.msra.mxu0 %v1023
    %1045 = vmatprep.subr.mxu0 0.0
    %1046 = vmatpush1.msra.mxu0 %v1024
    %1047 = vmatprep.subr.mxu0 0.0
    %1048 = vmatpush1.msra.mxu0 %v1025
    %1049 = vmatprep.subr.mxu0 0.0
    %1050 = vmatpush1.msra.mxu0 %v1026
    %1051 = vmatprep.subr.mxu0 0.0
    %1052 = vmatpush1.msra.mxu0 %v1027
    %1053 = vmatprep.subr.mxu0 0.0
    %1054 = vmatpush1.msra.mxu0 %v1028
    %1055 = vmatprep.subr.mxu0 0.0
    %1056 = vmatpush1.msra.mxu0 %v1029
    %1057 = vmatprep.subr.mxu0 0.0
    %1058 = vmatpush1.msra.mxu0 %v1030
    %1059 = vmatprep.subr.mxu0 0.0
    %1060 = vmatpush1.msra.mxu0 %v1031
    %1061 = vmatprep.subr.mxu0 0.0
    %1062 = vmatpush1.msra.mxu0 %v1032
    %1063 = vmatprep.subr.mxu0 0.0
    %1064 = vmatpush1.msra.mxu0 %v1033
    %1065 = vmatprep.subr.mxu0 0.0
    %1066 = vmatpush1.msra.mxu0 %v1034
    %1067 = vmatprep.subr.mxu0 0.0
    %1068 = vmatpush1.msra.mxu0 0.0
    %1069 = vmatprep.subr.mxu0 0.0
    %1070 = vmatpush1.msra.mxu0 0.0
    %1071 = vmatprep.subr.mxu0 0.0
    %1072 = vmatpush1.msra.mxu0 0.0
    %1073 = vmatprep.subr.mxu0 0.0
    %1074 = vmatpush1.msra.mxu0 0.0
    %1075 = vmatprep.subr.mxu0 0.0
    %1076 = vmatpush1.msra.mxu0 0.0
    %1077 = vmatprep.subr.mxu0 0.0
    %1078 = vmatpush1.msra.mxu0 0.0
    %1079 = vmatprep.subr.mxu0 0.0
    %1080 = vmatpush1.msra.mxu0 0.0
    %1081 = vmatprep.subr.mxu0 0.0
    %1082 = vmatpush1.msra.mxu0 0.0
    %1083 = vmatprep.subr.mxu0 0.0
    %1084 = vmatpush1.msra.mxu0 0.0
    %1085 = vmatprep.subr.mxu0 0.0
    %1086 = vmatpush1.msra.mxu0 0.0
    %1087 = vmatprep.subr.mxu0 0.0
    %1088 = vmatpush1.msra.mxu0 0.0
    %1089 = vmatprep.subr.mxu0 0.0
    %1090 = vmatpush1.msra.mxu0 0.0
    %1091 = vmatprep.subr.mxu0 0.0
    %1092 = vmatpush1.msra.mxu0 0.0
    %1093 = vmatprep.subr.mxu0 0.0
    %1094 = vmatpush1.msra.mxu0 0.0
    %1095 = vmatprep.subr.mxu0 0.0
    %1096 = vmatpush1.msra.mxu0 0.0
    %1097 = vmatprep.subr.mxu0 0.0
    %1098 = vmatpush1.msra.mxu0 0.0
    %1099 = vmatprep.mubr.f32.mxu0 0.0
    %1100 = vmatmul.mubr.f32.gmra.mrb[0].mxu0 %v1015
    %v1101 = vpop.f32.mrb[0].mxu0
    %v1102 = vadd.f32 0.0, %v1101
    %v1103 = vpop.f32.mrb[0].mxu0
    %1104 = vdwg.mxu0
    %v1105 = vmul.f32 %v906, 0.8
    %v1106 = vadd.f32 %v1105, %v1102
    %v1107 = vmul.f32 %v908, 0.9
    %v1108 = vadd.f32 %v1107, %v1106
    %v1109 = vsel %vm308, %v1108, 0.0
    %1110 = vst [vmem:[%s920 + $0x10] sm:$0xff] %v1109
    // Predicated region
    $region22: #{tpu_custom_call.1} parent=1 // pred_check
      _
    $region23: #{tpu_custom_call.1} parent=1 // pred_check_branch
      %1112 = sbr.rel (0) target = $region25
    $region24: #{tpu_custom_call.1} parent=1 // pred_region
      %s1114 = ssub.s32 2304, 2304
      %1115 = vsyncadd [#allocation4], %s1114
      %s1116 = sshll.u32 [#allocation5], 4
      %s1117 = int_to_ptr.vmem [resolvable:$true] %s1116
      %1122 = dma.vmem_to_hbm [thread:$0]  %s1117, 2304, %s4, [#allocation4], 384, 384, 24
    $region25: #{tpu_custom_call.1} parent=1 // pred_fallthru
      _
    // Predicated region
    $region26: #{tpu_custom_call.1} parent=1 // pred_check
      _
    $region27: #{tpu_custom_call.1} parent=1 // pred_check_branch
      %1124 = sbr.rel (0) target = $region29
    $region28: #{tpu_custom_call.1} parent=1 // pred_region
      %s1126 = ssub.s32 1536, 1536
      %1127 = vsyncadd [#allocation7], %s1126
      %s1128 = sshll.u32 [#allocation6], 4
      %s1129 = int_to_ptr.vmem [resolvable:$true] %s1128
      %1134 = dma.vmem_to_hbm [thread:$0]  %s1129, 1536, %s5, [#allocation7], 256, 256, 16
    $region29: #{tpu_custom_call.1} parent=1 // pred_fallthru
      _
    // Predicated region
    $region30: #{tpu_custom_call.1} parent=1 // pred_check
      _
    $region31: #{tpu_custom_call.1} parent=1 // pred_check_branch
      %1136 = sbr.rel (0) target = $region33
    $region32: #{tpu_custom_call.1} parent=1 // pred_region
      %1137 = dma.done [#allocation4], 2304
    $region33: #{tpu_custom_call.1} parent=1 // pred_fallthru
      _
    // Predicated region
    $region34: #{tpu_custom_call.1} parent=1 // pred_check
      _
    $region35: #{tpu_custom_call.1} parent=1 // pred_check_branch
      %1139 = sbr.rel (0) target = $region37
    $region36: #{tpu_custom_call.1} parent=1 // pred_region
      %1140 = dma.done [#allocation7], 1536
    $region37: #{tpu_custom_call.1} parent=1 // pred_fallthru
      _
    %1141 = vsyncpa [#allocation3], 1
    %1142 = vsyncpa [#allocation4], 1
    %1143 = vsyncpa [#allocation7], 1

</llo_original>
